<compile_context>
chip_gen: v7x
topology: tpu7x:2x2x1
jax: 0.10.0
libtpu: 0.0.40
codegen_flags: <defaults>
</compile_context>

<pallas_src>
import jax
import jax.numpy as jnp
from jax import lax
from jax.experimental import pallas as pl
from jax.experimental.pallas import tpu as pltpu


def _lstm_lm_kernel(x_ref, lens_ref, w_ih_ref, w_hh_ref, b_ref,
                    w_fc_ref, b_fc_ref, out_ref, gx_ref, hout_ref):
    """One batch block (NB rows) of the full forward pass.

    x_ref    : (T, NB, E)   embedded input, time-major
    lens_ref : (NB, 1)      int32 sequence lengths for this batch block
    w_ih_ref : (E, 4H)      input->gates weights (pre-transposed, PyTorch i,f,g,o)
    w_hh_ref : (H, 4H)      hidden->gates weights (pre-transposed)
    b_ref    : (1, 4H)      combined b_ih + b_hh
    w_fc_ref : (H, Vp)      fc weights (pre-transposed, V lane-padded to Vp)
    b_fc_ref : (1, Vp)      fc bias (lane-padded)
    out_ref  : (T, NB, Vp)  fc output, time-major
    gx_ref   : VMEM scratch (T, NB, 4H) — batched input projection
    hout_ref : VMEM scratch (T, NB, H)  — masked hidden states
    """
    T, NB, E = x_ref.shape
    H = w_hh_ref.shape[0]
    G = 4 * H                         # 128 lanes for H=32 -> one lane tile
    Vp = w_fc_ref.shape[1]

    # ---- prologue: hoisted, batched input projection (one MXU matmul) ----
    x_all = x_ref[...].reshape(T * NB, E)                            # (T*NB, E)
    gx = jnp.dot(x_all, w_ih_ref[...],
                 preferred_element_type=jnp.float32) + b_ref[...]    # (T*NB, 4H)
    gx_ref[...] = gx.reshape(T, NB, G)

    w_hh = w_hh_ref[...]                                             # (H, 4H)
    lens_v = lens_ref[...]                                           # (NB, 1) i32

    # Static lane mask selecting the "g" (cell-candidate) gate lanes [2H, 3H).
    lane = lax.broadcasted_iota(jnp.int32, (NB, G), 1)
    is_g = jnp.logical_and(lane >= 2 * H, lane < 3 * H)

    # ---- serial recurrence: one lane-dense gate matmul per step ----
    h = jnp.zeros((NB, H), jnp.float32)
    c = jnp.zeros((NB, H), jnp.float32)
    for t in range(T):
        pre = gx_ref[t] + jnp.dot(h, w_hh,
                                  preferred_element_type=jnp.float32)  # (NB, 4H)
        act = jnp.where(is_g, jnp.tanh(pre), jax.nn.sigmoid(pre))       # (NB, 4H)
        i_g = act[:, 0 * H:1 * H]
        f_g = act[:, 1 * H:2 * H]
        g_g = act[:, 2 * H:3 * H]
        o_g = act[:, 3 * H:4 * H]

        valid = t < lens_v                                 # (NB, 1) bool, t static
        c = jnp.where(valid, f_g * c + i_g * g_g, c)       # freeze past length
        h_cand = o_g * jnp.tanh(c)
        h = jnp.where(valid, h_cand, h)
        hout_ref[t] = jnp.where(valid, h_cand, 0.0)        # pad_packed zero-pads

    # TODO(synk): dropout(p=0.2) treated as identity (eval mode).

    # ---- epilogue: one batched, lane-dense FC over all (t, n) rows ----
    h_all = hout_ref[...].reshape(T * NB, H)
    out = jnp.dot(h_all, w_fc_ref[...],
                  preferred_element_type=jnp.float32) + b_fc_ref[...]   # (T*NB, Vp)
    out_ref[...] = out.reshape(T, NB, Vp)


def lstm_lm_forward(corpus, seq_lengths, max_len, params):
    """JAX wrapper reproducing Model.forward. Returns (N, max_len, vocab)."""
    embed_tbl = params["embed"]          # (V, E)
    w_ih = params["w_ih"]                # (4H, E)  PyTorch layout
    w_hh = params["w_hh"]                # (4H, H)
    b_ih = params["b_ih"]                # (4H,)
    b_hh = params["b_hh"]                # (4H,)
    w_fc = params["w_fc"]                # (V, H)
    b_fc = params["b_fc"]                # (V,)

    N, T = corpus.shape
    assert T == max_len
    V, E = embed_tbl.shape
    H = w_hh.shape[1]

    NB = 8                               # sublane-aligned batch tile
    Np = pl.cdiv(N, NB) * NB             # padded batch
    Vp = pl.cdiv(V, 128) * 128           # lane-dense FC output width

    # ---- glue: embedding gather + permute to time-major, batch padded ----
    x = jnp.take(embed_tbl, corpus, axis=0).astype(jnp.float32)      # (N, T, E)
    x = jnp.transpose(x, (1, 0, 2))                                  # (T, N, E)
    x = jnp.pad(x, ((0, 0), (0, Np - N), (0, 0)))                    # (T, Np, E)

    lens = jnp.pad(seq_lengths.astype(jnp.int32), (0, Np - N))
    lens = lens.reshape(Np, 1)                                       # padded rows: len 0

    w_ih_t = jnp.transpose(w_ih)                                     # (E, 4H)
    w_hh_t = jnp.transpose(w_hh)                                     # (H, 4H)
    b_all = (b_ih + b_hh).reshape(1, 4 * H)
    w_fc_t = jnp.pad(jnp.transpose(w_fc), ((0, 0), (0, Vp - V)))     # (H, Vp)
    b_fc_r = jnp.pad(b_fc, (0, Vp - V)).reshape(1, Vp)

    n_blk = Np // NB
    out_tm = pl.pallas_call(
        _lstm_lm_kernel,
        out_shape=jax.ShapeDtypeStruct((T, Np, Vp), jnp.float32),
        grid=(n_blk,),
        in_specs=[
            pl.BlockSpec((T, NB, E), lambda i: (0, i, 0)),       # x (time-major)
            pl.BlockSpec((NB, 1), lambda i: (i, 0)),             # seq lengths
            pl.BlockSpec((E, 4 * H), lambda i: (0, 0)),          # w_ih^T (resident)
            pl.BlockSpec((H, 4 * H), lambda i: (0, 0)),          # w_hh^T (resident)
            pl.BlockSpec((1, 4 * H), lambda i: (0, 0)),          # b
            pl.BlockSpec((H, Vp), lambda i: (0, 0)),             # w_fc^T (resident)
            pl.BlockSpec((1, Vp), lambda i: (0, 0)),             # b_fc
        ],
        out_specs=pl.BlockSpec((T, NB, Vp), lambda i: (0, i, 0)),
        scratch_shapes=[
            pltpu.VMEM((T, NB, 4 * H), jnp.float32),             # gx scratch
            pltpu.VMEM((T, NB, H), jnp.float32),                 # h_out scratch
        ],
        compiler_params=pltpu.CompilerParams(
            dimension_semantics=("parallel",)),
    )(x, lens, w_ih_t, w_hh_t, b_all, w_fc_t, b_fc_r)

    # Single wrapper-side permute: time-major -> batch-major; drop padding.
    return jnp.transpose(out_tm, (1, 0, 2))[:N, :, :V]


# ---------------- pure-JAX reference for verification ----------------
def _reference_forward(corpus, seq_lengths, max_len, params):
    embed_tbl = params["embed"]
    w_ih, w_hh = params["w_ih"], params["w_hh"]
    b_ih, b_hh = params["b_ih"], params["b_hh"]
    w_fc, b_fc = params["w_fc"], params["b_fc"]
    N, T = corpus.shape
    H = w_hh.shape[1]

    x = jnp.take(embed_tbl, corpus, axis=0).transpose(1, 0, 2)  # (T, N, E)
    lens = seq_lengths.astype(jnp.int32)

    def step(carry, inp):
        h, c = carry
        x_t, t = inp
        gates = x_t @ w_ih.T + h @ w_hh.T + b_ih + b_hh
        i_g = jax.nn.sigmoid(gates[:, 0 * H:1 * H])
        f_g = jax.nn.sigmoid(gates[:, 1 * H:2 * H])
        g_g = jnp.tanh(gates[:, 2 * H:3 * H])
        o_g = jax.nn.sigmoid(gates[:, 3 * H:4 * H])
        valid = (t < lens)[:, None]
        c_new = jnp.where(valid, f_g * c + i_g * g_g, c)
        h_new = jnp.where(valid, o_g * jnp.tanh(c_new), h)
        h_out = jnp.where(valid, h_new, 0.0)
        return (h_new, c_new), h_out @ w_fc.T + b_fc

    init = (jnp.zeros((N, H)), jnp.zeros((N, H)))
    _, outs = jax.lax.scan(step, init, (x, jnp.arange(T)))
    return outs.transpose(1, 0, 2)


if __name__ == "__main__":
    # small shapes implied by the module
    VOCAB, EMBED, HIDDEN = 64, 16, 32
    N, MAX_LEN = 2, 8

    key = jax.random.PRNGKey(0)
    ks = jax.random.split(key, 8)
    params = {
        "embed": jax.random.normal(ks[0], (VOCAB, EMBED), jnp.float32) * 0.1,
        "w_ih": jax.random.normal(ks[1], (4 * HIDDEN, EMBED), jnp.float32) * 0.1,
        "w_hh": jax.random.normal(ks[2], (4 * HIDDEN, HIDDEN), jnp.float32) * 0.1,
        "b_ih": jax.random.normal(ks[3], (4 * HIDDEN,), jnp.float32) * 0.1,
        "b_hh": jax.random.normal(ks[4], (4 * HIDDEN,), jnp.float32) * 0.1,
        "w_fc": jax.random.normal(ks[5], (VOCAB, HIDDEN), jnp.float32) * 0.1,
        "b_fc": jax.random.normal(ks[6], (VOCAB,), jnp.float32) * 0.1,
    }

    corpus = jax.random.randint(ks[7], (N, MAX_LEN), 0, VOCAB, dtype=jnp.int32)
    seq_lengths = jnp.array([8, 5], dtype=jnp.int32)  # sorted desc (pack_padded)

    out = lstm_lm_forward(corpus, seq_lengths, MAX_LEN, params)
    out = jax.block_until_ready(out)

    ref = _reference_forward(corpus, seq_lengths, MAX_LEN, params)
    assert out.shape == (N, MAX_LEN, VOCAB)
    assert jnp.allclose(out, ref, atol=1e-4, rtol=1e-4)
    print("KERNEL_OK")
</pallas_src>

<mosaic_0001>
module attributes {stable_mosaic.version = 11 : i64} {
  func.func @_lstm_lm_kernel(%arg0: i32, %arg1: memref<8x8x16xf32, #tpu.memory_space<vmem>>, %arg2: memref<8x1xi32, #tpu.memory_space<vmem>>, %arg3: memref<16x128xf32, #tpu.memory_space<vmem>>, %arg4: memref<32x128xf32, #tpu.memory_space<vmem>>, %arg5: memref<1x128xf32, #tpu.memory_space<vmem>>, %arg6: memref<32x128xf32, #tpu.memory_space<vmem>>, %arg7: memref<1x128xf32, #tpu.memory_space<vmem>>, %arg8: memref<8x8x128xf32, #tpu.memory_space<vmem>>, %arg9: memref<8x8x128xf32, #tpu.memory_space<vmem>>, %arg10: memref<8x8x32xf32, #tpu.memory_space<vmem>>) attributes {dimension_semantics = [#tpu.dimension_semantics<parallel>], iteration_bounds = array<i64: 1>, scalar_prefetch = 0 : i64, scratch_operands = 2 : i64, tpu.core_type = #tpu.core_type<tc>, window_params = [{transform_indices = @transform_0, window_bounds = array<i64: 8, 8, 16>}, {transform_indices = @transform_1, window_bounds = array<i64: 8, 1>}, {pipeline_mode = #tpu.pipeline_mode<synchronous>, transform_indices = @transform_2, window_bounds = array<i64: 16, 128>}, {pipeline_mode = #tpu.pipeline_mode<synchronous>, transform_indices = @transform_3, window_bounds = array<i64: 32, 128>}, {pipeline_mode = #tpu.pipeline_mode<synchronous>, transform_indices = @transform_4, window_bounds = array<i64: 1, 128>}, {pipeline_mode = #tpu.pipeline_mode<synchronous>, transform_indices = @transform_5, window_bounds = array<i64: 32, 128>}, {pipeline_mode = #tpu.pipeline_mode<synchronous>, transform_indices = @transform_6, window_bounds = array<i64: 1, 128>}, {transform_indices = @transform_7, window_bounds = array<i64: 8, 8, 128>}]} {
    %c0 = arith.constant 0 : index
    %c0_0 = arith.constant 0 : index
    %c0_1 = arith.constant 0 : index
    %0 = vector.load %arg1[%c0, %c0_0, %c0_1] : memref<8x8x16xf32, #tpu.memory_space<vmem>>, vector<8x8x16xf32>
    %1 = vector.shape_cast %0 : vector<8x8x16xf32> to vector<64x16xf32>
    %c0_2 = arith.constant 0 : index
    %c0_3 = arith.constant 0 : index
    %2 = vector.load %arg3[%c0_2, %c0_3] : memref<16x128xf32, #tpu.memory_space<vmem>>, vector<16x128xf32>
    %cst = arith.constant dense<0.000000e+00> : vector<64x128xf32>
    %3 = tpu.matmul %1, %2, %cst {dimension_numbers = #tpu.dot_dimension_numbers<[1], [0], [0], [1], [0, 0, 1, 1], [], []>} : vector<64x16xf32>, vector<16x128xf32>, vector<64x128xf32> -> vector<64x128xf32>
    %c0_4 = arith.constant 0 : index
    %c0_5 = arith.constant 0 : index
    %4 = vector.load %arg5[%c0_4, %c0_5] : memref<1x128xf32, #tpu.memory_space<vmem>>, vector<1x128xf32>
    %5 = vector.broadcast %4 : vector<1x128xf32> to vector<64x128xf32>
    %6 = arith.addf %3, %5 : vector<64x128xf32>
    %7 = vector.shape_cast %6 : vector<64x128xf32> to vector<8x8x128xf32>
    %c0_6 = arith.constant 0 : index
    %c0_7 = arith.constant 0 : index
    %c0_8 = arith.constant 0 : index
    %8 = vector.load %arg9[%c0_6, %c0_7, %c0_8] : memref<8x8x128xf32, #tpu.memory_space<vmem>>, vector<8x8x128xf32>
    tpu.vector_store %arg9[%c0_6, %c0_7, %c0_8], %7 {strides = array<i32>} : memref<8x8x128xf32, #tpu.memory_space<vmem>>, vector<8x8x128xf32>,
    %c0_9 = arith.constant 0 : index
    %c0_10 = arith.constant 0 : index
    %9 = vector.load %arg4[%c0_9, %c0_10] : memref<32x128xf32, #tpu.memory_space<vmem>>, vector<32x128xf32>
    %c0_11 = arith.constant 0 : index
    %c0_12 = arith.constant 0 : index
    %10 = vector.load %arg2[%c0_11, %c0_12] : memref<8x1xi32, #tpu.memory_space<vmem>>, vector<8x1xi32>
    %11 = tpu.iota {dimensions = array<i32: 1>} : vector<8x128xi32>
    %c64_i32 = arith.constant 64 : i32
    %12 = vector.broadcast %c64_i32 : i32 to vector<8x128xi32>
    %13 = arith.cmpi sge, %11, %12 : vector<8x128xi32>
    %c96_i32 = arith.constant 96 : i32
    %14 = vector.broadcast %c96_i32 : i32 to vector<8x128xi32>
    %15 = arith.cmpi slt, %11, %14 : vector<8x128xi32>
    %16 = arith.andi %13, %15 : vector<8x128xi1>
    %cst_13 = arith.constant 0.000000e+00 : f32
    %17 = vector.broadcast %cst_13 : f32 to vector<8x32xf32>
    %cst_14 = arith.constant 0.000000e+00 : f32
    %18 = vector.broadcast %cst_14 : f32 to vector<8x32xf32>
    %c0_15 = arith.constant 0 : index
    %c0_16 = arith.constant 0 : index
    %c0_17 = arith.constant 0 : index
    %19 = vector.load %arg9[%c0_15, %c0_16, %c0_17] : memref<8x8x128xf32, #tpu.memory_space<vmem>>, vector<1x8x128xf32>
    %20 = vector.shape_cast %19 : vector<1x8x128xf32> to vector<8x128xf32>
    %cst_18 = arith.constant dense<0.000000e+00> : vector<8x128xf32>
    %21 = tpu.matmul %17, %9, %cst_18 {dimension_numbers = #tpu.dot_dimension_numbers<[1], [0], [0], [1], [0, 0, 1, 1], [], []>} : vector<8x32xf32>, vector<32x128xf32>, vector<8x128xf32> -> vector<8x128xf32>
    %22 = arith.addf %20, %21 : vector<8x128xf32>
    %23 = math.tanh %22 : vector<8x128xf32>
    %24 = arith.negf %22 : vector<8x128xf32>
    %25 = math.exp %24 : vector<8x128xf32>
    %cst_19 = arith.constant 1.000000e+00 : f32
    %26 = vector.broadcast %cst_19 : f32 to vector<8x128xf32>
    %27 = arith.addf %26, %25 : vector<8x128xf32>
    %28 = arith.divf %26, %27 : vector<8x128xf32>
    %29 = arith.select %16, %23, %28 : vector<8x128xi1>, vector<8x128xf32>
    %30 = vector.extract_strided_slice %29 {offsets = [0, 0], sizes = [8, 32], strides = [1, 1]} : vector<8x128xf32> to vector<8x32xf32>
    %31 = vector.extract_strided_slice %29 {offsets = [0, 32], sizes = [8, 32], strides = [1, 1]} : vector<8x128xf32> to vector<8x32xf32>
    %32 = vector.extract_strided_slice %29 {offsets = [0, 64], sizes = [8, 32], strides = [1, 1]} : vector<8x128xf32> to vector<8x32xf32>
    %33 = vector.extract_strided_slice %29 {offsets = [0, 96], sizes = [8, 32], strides = [1, 1]} : vector<8x128xf32> to vector<8x32xf32>
    %c0_i32 = arith.constant 0 : i32
    %34 = vector.broadcast %c0_i32 : i32 to vector<8x1xi32>
    %35 = arith.cmpi sgt, %10, %34 : vector<8x1xi32>
    %36 = arith.mulf %31, %18 : vector<8x32xf32>
    %37 = arith.mulf %30, %32 : vector<8x32xf32>
    %38 = arith.addf %36, %37 : vector<8x32xf32>
    %39 = vector.shape_cast %35 : vector<8x1xi1> to vector<8x1xi1>
    %40 = vector.broadcast %39 : vector<8x1xi1> to vector<8x32xi1>
    %41 = arith.select %40, %38, %18 : vector<8x32xi1>, vector<8x32xf32>
    %42 = math.tanh %41 : vector<8x32xf32>
    %43 = arith.mulf %33, %42 : vector<8x32xf32>
    %44 = vector.shape_cast %35 : vector<8x1xi1> to vector<8x1xi1>
    %45 = vector.broadcast %44 : vector<8x1xi1> to vector<8x32xi1>
    %46 = arith.select %45, %43, %17 : vector<8x32xi1>, vector<8x32xf32>
    %cst_20 = arith.constant 0.000000e+00 : f32
    %47 = vector.shape_cast %35 : vector<8x1xi1> to vector<8x1xi1>
    %48 = vector.broadcast %47 : vector<8x1xi1> to vector<8x32xi1>
    %49 = vector.broadcast %cst_20 : f32 to vector<8x32xf32>
    %50 = arith.select %48, %43, %49 : vector<8x32xi1>, vector<8x32xf32>
    %c0_21 = arith.constant 0 : index
    %c0_22 = arith.constant 0 : index
    %c0_23 = arith.constant 0 : index
    %51 = vector.load %arg10[%c0_21, %c0_22, %c0_23] : memref<8x8x32xf32, #tpu.memory_space<vmem>>, vector<1x8x32xf32>
    %52 = vector.shape_cast %51 : vector<1x8x32xf32> to vector<8x32xf32>
    %53 = vector.shape_cast %50 : vector<8x32xf32> to vector<1x8x32xf32>
    tpu.vector_store %arg10[%c0_21, %c0_22, %c0_23], %53 {strides = array<i32>} : memref<8x8x32xf32, #tpu.memory_space<vmem>>, vector<1x8x32xf32>,
    %c1 = arith.constant 1 : index
    %c0_24 = arith.constant 0 : index
    %c0_25 = arith.constant 0 : index
    %54 = vector.load %arg9[%c1, %c0_24, %c0_25] : memref<8x8x128xf32, #tpu.memory_space<vmem>>, vector<1x8x128xf32>
    %55 = vector.shape_cast %54 : vector<1x8x128xf32> to vector<8x128xf32>
    %cst_26 = arith.constant dense<0.000000e+00> : vector<8x128xf32>
    %56 = tpu.matmul %46, %9, %cst_26 {dimension_numbers = #tpu.dot_dimension_numbers<[1], [0], [0], [1], [0, 0, 1, 1], [], []>} : vector<8x32xf32>, vector<32x128xf32>, vector<8x128xf32> -> vector<8x128xf32>
    %57 = arith.addf %55, %56 : vector<8x128xf32>
    %58 = math.tanh %57 : vector<8x128xf32>
    %59 = arith.negf %57 : vector<8x128xf32>
    %60 = math.exp %59 : vector<8x128xf32>
    %cst_27 = arith.constant 1.000000e+00 : f32
    %61 = vector.broadcast %cst_27 : f32 to vector<8x128xf32>
    %62 = arith.addf %61, %60 : vector<8x128xf32>
    %63 = arith.divf %61, %62 : vector<8x128xf32>
    %64 = arith.select %16, %58, %63 : vector<8x128xi1>, vector<8x128xf32>
    %65 = vector.extract_strided_slice %64 {offsets = [0, 0], sizes = [8, 32], strides = [1, 1]} : vector<8x128xf32> to vector<8x32xf32>
    %66 = vector.extract_strided_slice %64 {offsets = [0, 32], sizes = [8, 32], strides = [1, 1]} : vector<8x128xf32> to vector<8x32xf32>
    %67 = vector.extract_strided_slice %64 {offsets = [0, 64], sizes = [8, 32], strides = [1, 1]} : vector<8x128xf32> to vector<8x32xf32>
    %68 = vector.extract_strided_slice %64 {offsets = [0, 96], sizes = [8, 32], strides = [1, 1]} : vector<8x128xf32> to vector<8x32xf32>
    %c1_i32 = arith.constant 1 : i32
    %69 = vector.broadcast %c1_i32 : i32 to vector<8x1xi32>
    %70 = arith.cmpi sgt, %10, %69 : vector<8x1xi32>
    %71 = arith.mulf %66, %41 : vector<8x32xf32>
    %72 = arith.mulf %65, %67 : vector<8x32xf32>
    %73 = arith.addf %71, %72 : vector<8x32xf32>
    %74 = vector.shape_cast %70 : vector<8x1xi1> to vector<8x1xi1>
    %75 = vector.broadcast %74 : vector<8x1xi1> to vector<8x32xi1>
    %76 = arith.select %75, %73, %41 : vector<8x32xi1>, vector<8x32xf32>
    %77 = math.tanh %76 : vector<8x32xf32>
    %78 = arith.mulf %68, %77 : vector<8x32xf32>
    %79 = vector.shape_cast %70 : vector<8x1xi1> to vector<8x1xi1>
    %80 = vector.broadcast %79 : vector<8x1xi1> to vector<8x32xi1>
    %81 = arith.select %80, %78, %46 : vector<8x32xi1>, vector<8x32xf32>
    %cst_28 = arith.constant 0.000000e+00 : f32
    %82 = vector.shape_cast %70 : vector<8x1xi1> to vector<8x1xi1>
    %83 = vector.broadcast %82 : vector<8x1xi1> to vector<8x32xi1>
    %84 = vector.broadcast %cst_28 : f32 to vector<8x32xf32>
    %85 = arith.select %83, %78, %84 : vector<8x32xi1>, vector<8x32xf32>
    %c1_29 = arith.constant 1 : index
    %c0_30 = arith.constant 0 : index
    %c0_31 = arith.constant 0 : index
    %86 = vector.load %arg10[%c1_29, %c0_30, %c0_31] : memref<8x8x32xf32, #tpu.memory_space<vmem>>, vector<1x8x32xf32>
    %87 = vector.shape_cast %86 : vector<1x8x32xf32> to vector<8x32xf32>
    %88 = vector.shape_cast %85 : vector<8x32xf32> to vector<1x8x32xf32>
    tpu.vector_store %arg10[%c1_29, %c0_30, %c0_31], %88 {strides = array<i32>} : memref<8x8x32xf32, #tpu.memory_space<vmem>>, vector<1x8x32xf32>,
    %c2 = arith.constant 2 : index
    %c0_32 = arith.constant 0 : index
    %c0_33 = arith.constant 0 : index
    %89 = vector.load %arg9[%c2, %c0_32, %c0_33] : memref<8x8x128xf32, #tpu.memory_space<vmem>>, vector<1x8x128xf32>
    %90 = vector.shape_cast %89 : vector<1x8x128xf32> to vector<8x128xf32>
    %cst_34 = arith.constant dense<0.000000e+00> : vector<8x128xf32>
    %91 = tpu.matmul %81, %9, %cst_34 {dimension_numbers = #tpu.dot_dimension_numbers<[1], [0], [0], [1], [0, 0, 1, 1], [], []>} : vector<8x32xf32>, vector<32x128xf32>, vector<8x128xf32> -> vector<8x128xf32>
    %92 = arith.addf %90, %91 : vector<8x128xf32>
    %93 = math.tanh %92 : vector<8x128xf32>
    %94 = arith.negf %92 : vector<8x128xf32>
    %95 = math.exp %94 : vector<8x128xf32>
    %cst_35 = arith.constant 1.000000e+00 : f32
    %96 = vector.broadcast %cst_35 : f32 to vector<8x128xf32>
    %97 = arith.addf %96, %95 : vector<8x128xf32>
    %98 = arith.divf %96, %97 : vector<8x128xf32>
    %99 = arith.select %16, %93, %98 : vector<8x128xi1>, vector<8x128xf32>
    %100 = vector.extract_strided_slice %99 {offsets = [0, 0], sizes = [8, 32], strides = [1, 1]} : vector<8x128xf32> to vector<8x32xf32>
    %101 = vector.extract_strided_slice %99 {offsets = [0, 32], sizes = [8, 32], strides = [1, 1]} : vector<8x128xf32> to vector<8x32xf32>
    %102 = vector.extract_strided_slice %99 {offsets = [0, 64], sizes = [8, 32], strides = [1, 1]} : vector<8x128xf32> to vector<8x32xf32>
    %103 = vector.extract_strided_slice %99 {offsets = [0, 96], sizes = [8, 32], strides = [1, 1]} : vector<8x128xf32> to vector<8x32xf32>
    %c2_i32 = arith.constant 2 : i32
    %104 = vector.broadcast %c2_i32 : i32 to vector<8x1xi32>
    %105 = arith.cmpi sgt, %10, %104 : vector<8x1xi32>
    %106 = arith.mulf %101, %76 : vector<8x32xf32>
    %107 = arith.mulf %100, %102 : vector<8x32xf32>
    %108 = arith.addf %106, %107 : vector<8x32xf32>
    %109 = vector.shape_cast %105 : vector<8x1xi1> to vector<8x1xi1>
    %110 = vector.broadcast %109 : vector<8x1xi1> to vector<8x32xi1>
    %111 = arith.select %110, %108, %76 : vector<8x32xi1>, vector<8x32xf32>
    %112 = math.tanh %111 : vector<8x32xf32>
    %113 = arith.mulf %103, %112 : vector<8x32xf32>
    %114 = vector.shape_cast %105 : vector<8x1xi1> to vector<8x1xi1>
    %115 = vector.broadcast %114 : vector<8x1xi1> to vector<8x32xi1>
    %116 = arith.select %115, %113, %81 : vector<8x32xi1>, vector<8x32xf32>
    %cst_36 = arith.constant 0.000000e+00 : f32
    %117 = vector.shape_cast %105 : vector<8x1xi1> to vector<8x1xi1>
    %118 = vector.broadcast %117 : vector<8x1xi1> to vector<8x32xi1>
    %119 = vector.broadcast %cst_36 : f32 to vector<8x32xf32>
    %120 = arith.select %118, %113, %119 : vector<8x32xi1>, vector<8x32xf32>
    %c2_37 = arith.constant 2 : index
    %c0_38 = arith.constant 0 : index
    %c0_39 = arith.constant 0 : index
    %121 = vector.load %arg10[%c2_37, %c0_38, %c0_39] : memref<8x8x32xf32, #tpu.memory_space<vmem>>, vector<1x8x32xf32>
    %122 = vector.shape_cast %121 : vector<1x8x32xf32> to vector<8x32xf32>
    %123 = vector.shape_cast %120 : vector<8x32xf32> to vector<1x8x32xf32>
    tpu.vector_store %arg10[%c2_37, %c0_38, %c0_39], %123 {strides = array<i32>} : memref<8x8x32xf32, #tpu.memory_space<vmem>>, vector<1x8x32xf32>,
    %c3 = arith.constant 3 : index
    %c0_40 = arith.constant 0 : index
    %c0_41 = arith.constant 0 : index
    %124 = vector.load %arg9[%c3, %c0_40, %c0_41] : memref<8x8x128xf32, #tpu.memory_space<vmem>>, vector<1x8x128xf32>
    %125 = vector.shape_cast %124 : vector<1x8x128xf32> to vector<8x128xf32>
    %cst_42 = arith.constant dense<0.000000e+00> : vector<8x128xf32>
    %126 = tpu.matmul %116, %9, %cst_42 {dimension_numbers = #tpu.dot_dimension_numbers<[1], [0], [0], [1], [0, 0, 1, 1], [], []>} : vector<8x32xf32>, vector<32x128xf32>, vector<8x128xf32> -> vector<8x128xf32>
    %127 = arith.addf %125, %126 : vector<8x128xf32>
    %128 = math.tanh %127 : vector<8x128xf32>
    %129 = arith.negf %127 : vector<8x128xf32>
    %130 = math.exp %129 : vector<8x128xf32>
    %cst_43 = arith.constant 1.000000e+00 : f32
    %131 = vector.broadcast %cst_43 : f32 to vector<8x128xf32>
    %132 = arith.addf %131, %130 : vector<8x128xf32>
    %133 = arith.divf %131, %132 : vector<8x128xf32>
    %134 = arith.select %16, %128, %133 : vector<8x128xi1>, vector<8x128xf32>
    %135 = vector.extract_strided_slice %134 {offsets = [0, 0], sizes = [8, 32], strides = [1, 1]} : vector<8x128xf32> to vector<8x32xf32>
    %136 = vector.extract_strided_slice %134 {offsets = [0, 32], sizes = [8, 32], strides = [1, 1]} : vector<8x128xf32> to vector<8x32xf32>
    %137 = vector.extract_strided_slice %134 {offsets = [0, 64], sizes = [8, 32], strides = [1, 1]} : vector<8x128xf32> to vector<8x32xf32>
    %138 = vector.extract_strided_slice %134 {offsets = [0, 96], sizes = [8, 32], strides = [1, 1]} : vector<8x128xf32> to vector<8x32xf32>
    %c3_i32 = arith.constant 3 : i32
    %139 = vector.broadcast %c3_i32 : i32 to vector<8x1xi32>
    %140 = arith.cmpi sgt, %10, %139 : vector<8x1xi32>
    %141 = arith.mulf %136, %111 : vector<8x32xf32>
    %142 = arith.mulf %135, %137 : vector<8x32xf32>
    %143 = arith.addf %141, %142 : vector<8x32xf32>
    %144 = vector.shape_cast %140 : vector<8x1xi1> to vector<8x1xi1>
    %145 = vector.broadcast %144 : vector<8x1xi1> to vector<8x32xi1>
    %146 = arith.select %145, %143, %111 : vector<8x32xi1>, vector<8x32xf32>
    %147 = math.tanh %146 : vector<8x32xf32>
    %148 = arith.mulf %138, %147 : vector<8x32xf32>
    %149 = vector.shape_cast %140 : vector<8x1xi1> to vector<8x1xi1>
    %150 = vector.broadcast %149 : vector<8x1xi1> to vector<8x32xi1>
    %151 = arith.select %150, %148, %116 : vector<8x32xi1>, vector<8x32xf32>
    %cst_44 = arith.constant 0.000000e+00 : f32
    %152 = vector.shape_cast %140 : vector<8x1xi1> to vector<8x1xi1>
    %153 = vector.broadcast %152 : vector<8x1xi1> to vector<8x32xi1>
    %154 = vector.broadcast %cst_44 : f32 to vector<8x32xf32>
    %155 = arith.select %153, %148, %154 : vector<8x32xi1>, vector<8x32xf32>
    %c3_45 = arith.constant 3 : index
    %c0_46 = arith.constant 0 : index
    %c0_47 = arith.constant 0 : index
    %156 = vector.load %arg10[%c3_45, %c0_46, %c0_47] : memref<8x8x32xf32, #tpu.memory_space<vmem>>, vector<1x8x32xf32>
    %157 = vector.shape_cast %156 : vector<1x8x32xf32> to vector<8x32xf32>
    %158 = vector.shape_cast %155 : vector<8x32xf32> to vector<1x8x32xf32>
    tpu.vector_store %arg10[%c3_45, %c0_46, %c0_47], %158 {strides = array<i32>} : memref<8x8x32xf32, #tpu.memory_space<vmem>>, vector<1x8x32xf32>,
    %c4 = arith.constant 4 : index
    %c0_48 = arith.constant 0 : index
    %c0_49 = arith.constant 0 : index
    %159 = vector.load %arg9[%c4, %c0_48, %c0_49] : memref<8x8x128xf32, #tpu.memory_space<vmem>>, vector<1x8x128xf32>
    %160 = vector.shape_cast %159 : vector<1x8x128xf32> to vector<8x128xf32>
    %cst_50 = arith.constant dense<0.000000e+00> : vector<8x128xf32>
    %161 = tpu.matmul %151, %9, %cst_50 {dimension_numbers = #tpu.dot_dimension_numbers<[1], [0], [0], [1], [0, 0, 1, 1], [], []>} : vector<8x32xf32>, vector<32x128xf32>, vector<8x128xf32> -> vector<8x128xf32>
    %162 = arith.addf %160, %161 : vector<8x128xf32>
    %163 = math.tanh %162 : vector<8x128xf32>
    %164 = arith.negf %162 : vector<8x128xf32>
    %165 = math.exp %164 : vector<8x128xf32>
    %cst_51 = arith.constant 1.000000e+00 : f32
    %166 = vector.broadcast %cst_51 : f32 to vector<8x128xf32>
    %167 = arith.addf %166, %165 : vector<8x128xf32>
    %168 = arith.divf %166, %167 : vector<8x128xf32>
    %169 = arith.select %16, %163, %168 : vector<8x128xi1>, vector<8x128xf32>
    %170 = vector.extract_strided_slice %169 {offsets = [0, 0], sizes = [8, 32], strides = [1, 1]} : vector<8x128xf32> to vector<8x32xf32>
    %171 = vector.extract_strided_slice %169 {offsets = [0, 32], sizes = [8, 32], strides = [1, 1]} : vector<8x128xf32> to vector<8x32xf32>
    %172 = vector.extract_strided_slice %169 {offsets = [0, 64], sizes = [8, 32], strides = [1, 1]} : vector<8x128xf32> to vector<8x32xf32>
    %173 = vector.extract_strided_slice %169 {offsets = [0, 96], sizes = [8, 32], strides = [1, 1]} : vector<8x128xf32> to vector<8x32xf32>
    %c4_i32 = arith.constant 4 : i32
    %174 = vector.broadcast %c4_i32 : i32 to vector<8x1xi32>
    %175 = arith.cmpi sgt, %10, %174 : vector<8x1xi32>
    %176 = arith.mulf %171, %146 : vector<8x32xf32>
    %177 = arith.mulf %170, %172 : vector<8x32xf32>
    %178 = arith.addf %176, %177 : vector<8x32xf32>
    %179 = vector.shape_cast %175 : vector<8x1xi1> to vector<8x1xi1>
    %180 = vector.broadcast %179 : vector<8x1xi1> to vector<8x32xi1>
    %181 = arith.select %180, %178, %146 : vector<8x32xi1>, vector<8x32xf32>
    %182 = math.tanh %181 : vector<8x32xf32>
    %183 = arith.mulf %173, %182 : vector<8x32xf32>
    %184 = vector.shape_cast %175 : vector<8x1xi1> to vector<8x1xi1>
    %185 = vector.broadcast %184 : vector<8x1xi1> to vector<8x32xi1>
    %186 = arith.select %185, %183, %151 : vector<8x32xi1>, vector<8x32xf32>
    %cst_52 = arith.constant 0.000000e+00 : f32
    %187 = vector.shape_cast %175 : vector<8x1xi1> to vector<8x1xi1>
    %188 = vector.broadcast %187 : vector<8x1xi1> to vector<8x32xi1>
    %189 = vector.broadcast %cst_52 : f32 to vector<8x32xf32>
    %190 = arith.select %188, %183, %189 : vector<8x32xi1>, vector<8x32xf32>
    %c4_53 = arith.constant 4 : index
    %c0_54 = arith.constant 0 : index
    %c0_55 = arith.constant 0 : index
    %191 = vector.load %arg10[%c4_53, %c0_54, %c0_55] : memref<8x8x32xf32, #tpu.memory_space<vmem>>, vector<1x8x32xf32>
    %192 = vector.shape_cast %191 : vector<1x8x32xf32> to vector<8x32xf32>
    %193 = vector.shape_cast %190 : vector<8x32xf32> to vector<1x8x32xf32>
    tpu.vector_store %arg10[%c4_53, %c0_54, %c0_55], %193 {strides = array<i32>} : memref<8x8x32xf32, #tpu.memory_space<vmem>>, vector<1x8x32xf32>,
    %c5 = arith.constant 5 : index
    %c0_56 = arith.constant 0 : index
    %c0_57 = arith.constant 0 : index
    %194 = vector.load %arg9[%c5, %c0_56, %c0_57] : memref<8x8x128xf32, #tpu.memory_space<vmem>>, vector<1x8x128xf32>
    %195 = vector.shape_cast %194 : vector<1x8x128xf32> to vector<8x128xf32>
    %cst_58 = arith.constant dense<0.000000e+00> : vector<8x128xf32>
    %196 = tpu.matmul %186, %9, %cst_58 {dimension_numbers = #tpu.dot_dimension_numbers<[1], [0], [0], [1], [0, 0, 1, 1], [], []>} : vector<8x32xf32>, vector<32x128xf32>, vector<8x128xf32> -> vector<8x128xf32>
    %197 = arith.addf %195, %196 : vector<8x128xf32>
    %198 = math.tanh %197 : vector<8x128xf32>
    %199 = arith.negf %197 : vector<8x128xf32>
    %200 = math.exp %199 : vector<8x128xf32>
    %cst_59 = arith.constant 1.000000e+00 : f32
    %201 = vector.broadcast %cst_59 : f32 to vector<8x128xf32>
    %202 = arith.addf %201, %200 : vector<8x128xf32>
    %203 = arith.divf %201, %202 : vector<8x128xf32>
    %204 = arith.select %16, %198, %203 : vector<8x128xi1>, vector<8x128xf32>
    %205 = vector.extract_strided_slice %204 {offsets = [0, 0], sizes = [8, 32], strides = [1, 1]} : vector<8x128xf32> to vector<8x32xf32>
    %206 = vector.extract_strided_slice %204 {offsets = [0, 32], sizes = [8, 32], strides = [1, 1]} : vector<8x128xf32> to vector<8x32xf32>
    %207 = vector.extract_strided_slice %204 {offsets = [0, 64], sizes = [8, 32], strides = [1, 1]} : vector<8x128xf32> to vector<8x32xf32>
    %208 = vector.extract_strided_slice %204 {offsets = [0, 96], sizes = [8, 32], strides = [1, 1]} : vector<8x128xf32> to vector<8x32xf32>
    %c5_i32 = arith.constant 5 : i32
    %209 = vector.broadcast %c5_i32 : i32 to vector<8x1xi32>
    %210 = arith.cmpi sgt, %10, %209 : vector<8x1xi32>
    %211 = arith.mulf %206, %181 : vector<8x32xf32>
    %212 = arith.mulf %205, %207 : vector<8x32xf32>
    %213 = arith.addf %211, %212 : vector<8x32xf32>
    %214 = vector.shape_cast %210 : vector<8x1xi1> to vector<8x1xi1>
    %215 = vector.broadcast %214 : vector<8x1xi1> to vector<8x32xi1>
    %216 = arith.select %215, %213, %181 : vector<8x32xi1>, vector<8x32xf32>
    %217 = math.tanh %216 : vector<8x32xf32>
    %218 = arith.mulf %208, %217 : vector<8x32xf32>
    %219 = vector.shape_cast %210 : vector<8x1xi1> to vector<8x1xi1>
    %220 = vector.broadcast %219 : vector<8x1xi1> to vector<8x32xi1>
    %221 = arith.select %220, %218, %186 : vector<8x32xi1>, vector<8x32xf32>
    %cst_60 = arith.constant 0.000000e+00 : f32
    %222 = vector.shape_cast %210 : vector<8x1xi1> to vector<8x1xi1>
    %223 = vector.broadcast %222 : vector<8x1xi1> to vector<8x32xi1>
    %224 = vector.broadcast %cst_60 : f32 to vector<8x32xf32>
    %225 = arith.select %223, %218, %224 : vector<8x32xi1>, vector<8x32xf32>
    %c5_61 = arith.constant 5 : index
    %c0_62 = arith.constant 0 : index
    %c0_63 = arith.constant 0 : index
    %226 = vector.load %arg10[%c5_61, %c0_62, %c0_63] : memref<8x8x32xf32, #tpu.memory_space<vmem>>, vector<1x8x32xf32>
    %227 = vector.shape_cast %226 : vector<1x8x32xf32> to vector<8x32xf32>
    %228 = vector.shape_cast %225 : vector<8x32xf32> to vector<1x8x32xf32>
    tpu.vector_store %arg10[%c5_61, %c0_62, %c0_63], %228 {strides = array<i32>} : memref<8x8x32xf32, #tpu.memory_space<vmem>>, vector<1x8x32xf32>,
    %c6 = arith.constant 6 : index
    %c0_64 = arith.constant 0 : index
    %c0_65 = arith.constant 0 : index
    %229 = vector.load %arg9[%c6, %c0_64, %c0_65] : memref<8x8x128xf32, #tpu.memory_space<vmem>>, vector<1x8x128xf32>
    %230 = vector.shape_cast %229 : vector<1x8x128xf32> to vector<8x128xf32>
    %cst_66 = arith.constant dense<0.000000e+00> : vector<8x128xf32>
    %231 = tpu.matmul %221, %9, %cst_66 {dimension_numbers = #tpu.dot_dimension_numbers<[1], [0], [0], [1], [0, 0, 1, 1], [], []>} : vector<8x32xf32>, vector<32x128xf32>, vector<8x128xf32> -> vector<8x128xf32>
    %232 = arith.addf %230, %231 : vector<8x128xf32>
    %233 = math.tanh %232 : vector<8x128xf32>
    %234 = arith.negf %232 : vector<8x128xf32>
    %235 = math.exp %234 : vector<8x128xf32>
    %cst_67 = arith.constant 1.000000e+00 : f32
    %236 = vector.broadcast %cst_67 : f32 to vector<8x128xf32>
    %237 = arith.addf %236, %235 : vector<8x128xf32>
    %238 = arith.divf %236, %237 : vector<8x128xf32>
    %239 = arith.select %16, %233, %238 : vector<8x128xi1>, vector<8x128xf32>
    %240 = vector.extract_strided_slice %239 {offsets = [0, 0], sizes = [8, 32], strides = [1, 1]} : vector<8x128xf32> to vector<8x32xf32>
    %241 = vector.extract_strided_slice %239 {offsets = [0, 32], sizes = [8, 32], strides = [1, 1]} : vector<8x128xf32> to vector<8x32xf32>
    %242 = vector.extract_strided_slice %239 {offsets = [0, 64], sizes = [8, 32], strides = [1, 1]} : vector<8x128xf32> to vector<8x32xf32>
    %243 = vector.extract_strided_slice %239 {offsets = [0, 96], sizes = [8, 32], strides = [1, 1]} : vector<8x128xf32> to vector<8x32xf32>
    %c6_i32 = arith.constant 6 : i32
    %244 = vector.broadcast %c6_i32 : i32 to vector<8x1xi32>
    %245 = arith.cmpi sgt, %10, %244 : vector<8x1xi32>
    %246 = arith.mulf %241, %216 : vector<8x32xf32>
    %247 = arith.mulf %240, %242 : vector<8x32xf32>
    %248 = arith.addf %246, %247 : vector<8x32xf32>
    %249 = vector.shape_cast %245 : vector<8x1xi1> to vector<8x1xi1>
    %250 = vector.broadcast %249 : vector<8x1xi1> to vector<8x32xi1>
    %251 = arith.select %250, %248, %216 : vector<8x32xi1>, vector<8x32xf32>
    %252 = math.tanh %251 : vector<8x32xf32>
    %253 = arith.mulf %243, %252 : vector<8x32xf32>
    %254 = vector.shape_cast %245 : vector<8x1xi1> to vector<8x1xi1>
    %255 = vector.broadcast %254 : vector<8x1xi1> to vector<8x32xi1>
    %256 = arith.select %255, %253, %221 : vector<8x32xi1>, vector<8x32xf32>
    %cst_68 = arith.constant 0.000000e+00 : f32
    %257 = vector.shape_cast %245 : vector<8x1xi1> to vector<8x1xi1>
    %258 = vector.broadcast %257 : vector<8x1xi1> to vector<8x32xi1>
    %259 = vector.broadcast %cst_68 : f32 to vector<8x32xf32>
    %260 = arith.select %258, %253, %259 : vector<8x32xi1>, vector<8x32xf32>
    %c6_69 = arith.constant 6 : index
    %c0_70 = arith.constant 0 : index
    %c0_71 = arith.constant 0 : index
    %261 = vector.load %arg10[%c6_69, %c0_70, %c0_71] : memref<8x8x32xf32, #tpu.memory_space<vmem>>, vector<1x8x32xf32>
    %262 = vector.shape_cast %261 : vector<1x8x32xf32> to vector<8x32xf32>
    %263 = vector.shape_cast %260 : vector<8x32xf32> to vector<1x8x32xf32>
    tpu.vector_store %arg10[%c6_69, %c0_70, %c0_71], %263 {strides = array<i32>} : memref<8x8x32xf32, #tpu.memory_space<vmem>>, vector<1x8x32xf32>,
    %c7 = arith.constant 7 : index
    %c0_72 = arith.constant 0 : index
    %c0_73 = arith.constant 0 : index
    %264 = vector.load %arg9[%c7, %c0_72, %c0_73] : memref<8x8x128xf32, #tpu.memory_space<vmem>>, vector<1x8x128xf32>
    %265 = vector.shape_cast %264 : vector<1x8x128xf32> to vector<8x128xf32>
    %cst_74 = arith.constant dense<0.000000e+00> : vector<8x128xf32>
    %266 = tpu.matmul %256, %9, %cst_74 {dimension_numbers = #tpu.dot_dimension_numbers<[1], [0], [0], [1], [0, 0, 1, 1], [], []>} : vector<8x32xf32>, vector<32x128xf32>, vector<8x128xf32> -> vector<8x128xf32>
    %267 = arith.addf %265, %266 : vector<8x128xf32>
    %268 = math.tanh %267 : vector<8x128xf32>
    %269 = arith.negf %267 : vector<8x128xf32>
    %270 = math.exp %269 : vector<8x128xf32>
    %cst_75 = arith.constant 1.000000e+00 : f32
    %271 = vector.broadcast %cst_75 : f32 to vector<8x128xf32>
    %272 = arith.addf %271, %270 : vector<8x128xf32>
    %273 = arith.divf %271, %272 : vector<8x128xf32>
    %274 = arith.select %16, %268, %273 : vector<8x128xi1>, vector<8x128xf32>
    %275 = vector.extract_strided_slice %274 {offsets = [0, 0], sizes = [8, 32], strides = [1, 1]} : vector<8x128xf32> to vector<8x32xf32>
    %276 = vector.extract_strided_slice %274 {offsets = [0, 32], sizes = [8, 32], strides = [1, 1]} : vector<8x128xf32> to vector<8x32xf32>
    %277 = vector.extract_strided_slice %274 {offsets = [0, 64], sizes = [8, 32], strides = [1, 1]} : vector<8x128xf32> to vector<8x32xf32>
    %278 = vector.extract_strided_slice %274 {offsets = [0, 96], sizes = [8, 32], strides = [1, 1]} : vector<8x128xf32> to vector<8x32xf32>
    %c7_i32 = arith.constant 7 : i32
    %279 = vector.broadcast %c7_i32 : i32 to vector<8x1xi32>
    %280 = arith.cmpi sgt, %10, %279 : vector<8x1xi32>
    %281 = arith.mulf %276, %251 : vector<8x32xf32>
    %282 = arith.mulf %275, %277 : vector<8x32xf32>
    %283 = arith.addf %281, %282 : vector<8x32xf32>
    %284 = vector.shape_cast %280 : vector<8x1xi1> to vector<8x1xi1>
    %285 = vector.broadcast %284 : vector<8x1xi1> to vector<8x32xi1>
    %286 = arith.select %285, %283, %251 : vector<8x32xi1>, vector<8x32xf32>
    %287 = math.tanh %286 : vector<8x32xf32>
    %288 = arith.mulf %278, %287 : vector<8x32xf32>
    %cst_76 = arith.constant 0.000000e+00 : f32
    %289 = vector.shape_cast %280 : vector<8x1xi1> to vector<8x1xi1>
    %290 = vector.broadcast %289 : vector<8x1xi1> to vector<8x32xi1>
    %291 = vector.broadcast %cst_76 : f32 to vector<8x32xf32>
    %292 = arith.select %290, %288, %291 : vector<8x32xi1>, vector<8x32xf32>
    %c7_77 = arith.constant 7 : index
    %c0_78 = arith.constant 0 : index
    %c0_79 = arith.constant 0 : index
    %293 = vector.load %arg10[%c7_77, %c0_78, %c0_79] : memref<8x8x32xf32, #tpu.memory_space<vmem>>, vector<1x8x32xf32>
    %294 = vector.shape_cast %293 : vector<1x8x32xf32> to vector<8x32xf32>
    %295 = vector.shape_cast %292 : vector<8x32xf32> to vector<1x8x32xf32>
    tpu.vector_store %arg10[%c7_77, %c0_78, %c0_79], %295 {strides = array<i32>} : memref<8x8x32xf32, #tpu.memory_space<vmem>>, vector<1x8x32xf32>,
    %c0_80 = arith.constant 0 : index
    %c0_81 = arith.constant 0 : index
    %c0_82 = arith.constant 0 : index
    %296 = vector.load %arg10[%c0_80, %c0_81, %c0_82] : memref<8x8x32xf32, #tpu.memory_space<vmem>>, vector<8x8x32xf32>
    %297 = vector.shape_cast %296 : vector<8x8x32xf32> to vector<64x32xf32>
    %c0_83 = arith.constant 0 : index
    %c0_84 = arith.constant 0 : index
    %298 = vector.load %arg6[%c0_83, %c0_84] : memref<32x128xf32, #tpu.memory_space<vmem>>, vector<32x128xf32>
    %cst_85 = arith.constant dense<0.000000e+00> : vector<64x128xf32>
    %299 = tpu.matmul %297, %298, %cst_85 {dimension_numbers = #tpu.dot_dimension_numbers<[1], [0], [0], [1], [0, 0, 1, 1], [], []>} : vector<64x32xf32>, vector<32x128xf32>, vector<64x128xf32> -> vector<64x128xf32>
    %c0_86 = arith.constant 0 : index
    %c0_87 = arith.constant 0 : index
    %300 = vector.load %arg7[%c0_86, %c0_87] : memref<1x128xf32, #tpu.memory_space<vmem>>, vector<1x128xf32>
    %301 = vector.broadcast %300 : vector<1x128xf32> to vector<64x128xf32>
    %302 = arith.addf %299, %301 : vector<64x128xf32>
    %303 = vector.shape_cast %302 : vector<64x128xf32> to vector<8x8x128xf32>
    %c0_88 = arith.constant 0 : index
    %c0_89 = arith.constant 0 : index
    %c0_90 = arith.constant 0 : index
    %304 = vector.load %arg8[%c0_88, %c0_89, %c0_90] : memref<8x8x128xf32, #tpu.memory_space<vmem>>, vector<8x8x128xf32>
    tpu.vector_store %arg8[%c0_88, %c0_89, %c0_90], %303 {strides = array<i32>} : memref<8x8x128xf32, #tpu.memory_space<vmem>>, vector<8x8x128xf32>,
    return
  }
  func.func @transform_0(%arg0: i32) -> (i32, i32, i32) {
    %c0_i32 = arith.constant 0 : i32
    %c0_i32_0 = arith.constant 0 : i32
    %c0_i32_1 = arith.constant 0 : i32
    return %c0_i32, %arg0, %c0_i32_0 : i32, i32, i32
  }
  func.func @transform_1(%arg0: i32) -> (i32, i32) {
    %c0_i32 = arith.constant 0 : i32
    %c0_i32_0 = arith.constant 0 : i32
    return %arg0, %c0_i32 : i32, i32
  }
  func.func @transform_2(%arg0: i32) -> (i32, i32) {
    %c0_i32 = arith.constant 0 : i32
    %c0_i32_0 = arith.constant 0 : i32
    %c0_i32_1 = arith.constant 0 : i32
    return %c0_i32, %c0_i32_0 : i32, i32
  }
  func.func @transform_3(%arg0: i32) -> (i32, i32) {
    %c0_i32 = arith.constant 0 : i32
    %c0_i32_0 = arith.constant 0 : i32
    %c0_i32_1 = arith.constant 0 : i32
    return %c0_i32, %c0_i32_0 : i32, i32
  }
  func.func @transform_4(%arg0: i32) -> (i32, i32) {
    %c0_i32 = arith.constant 0 : i32
    %c0_i32_0 = arith.constant 0 : i32
    %c0_i32_1 = arith.constant 0 : i32
    return %c0_i32, %c0_i32_0 : i32, i32
  }
  func.func @transform_5(%arg0: i32) -> (i32, i32) {
    %c0_i32 = arith.constant 0 : i32
    %c0_i32_0 = arith.constant 0 : i32
    %c0_i32_1 = arith.constant 0 : i32
    return %c0_i32, %c0_i32_0 : i32, i32
  }
  func.func @transform_6(%arg0: i32) -> (i32, i32) {
    %c0_i32 = arith.constant 0 : i32
    %c0_i32_0 = arith.constant 0 : i32
    %c0_i32_1 = arith.constant 0 : i32
    return %c0_i32, %c0_i32_0 : i32, i32
  }
  func.func @transform_7(%arg0: i32) -> (i32, i32, i32) {
    %c0_i32 = arith.constant 0 : i32
    %c0_i32_0 = arith.constant 0 : i32
    %c0_i32_1 = arith.constant 0 : i32
    return %c0_i32, %arg0, %c0_i32_0 : i32, i32, i32
  }
}

</mosaic_0001>

<llo_original>
// kernel: tpu_custom_call.1
$region0: #{tpu_custom_call.1}
  #allocation0 [shape = 'u32[]', space=smem, size = 0x4, offset = 0x4, fixed_abs, tag = 'smem constant byte address 0x4 - core index']
  #allocation1 [shape = 'u32[144,128]{1,0:T(1,128)}', space=vmem, size = 0x12000, scoped, tag = 'internal scratch']
  #allocation2 [shape = 'f32[8,8,128]{2,1,0:T(8,128)}', space=vmem, size = 0x8000, scoped, tag = 'scratch operand']
  #allocation3 [shape = 'f32[8,8,32]{2,1,0:T(8,128)}', space=vmem, size = 0x8000, scoped, tag = 'scratch operand']
  %s0 = inlined_call_operand.hbm [shape: f32[8,8,16], index: 0, kind: input, shape index: {}]
  %s1 = inlined_call_operand.vmem [shape: s32[8,1], index: 1, kind: input, shape index: {}]
  %s2 = inlined_call_operand.vmem [shape: f32[16,128], index: 2, kind: input, shape index: {}]
  %s3 = inlined_call_operand.hbm [shape: f32[32,128], index: 3, kind: input, shape index: {}]
  %s4 = inlined_call_operand.vmem [shape: f32[1,128], index: 4, kind: input, shape index: {}]
  %s5 = inlined_call_operand.hbm [shape: f32[32,128], index: 5, kind: input, shape index: {}]
  %s6 = inlined_call_operand.vmem [shape: f32[1,128], index: 6, kind: input, shape index: {}]
  %s7 = inlined_call_operand.hbm [shape: f32[8,8,128], index: 7, kind: output, shape index: {}]
  %s8 = sld [smem:[#allocation0]]
  $region50: #{tpu_custom_call.1} parent=0
    _
  %s10 = ssub.s32 1, %s8
  %s11 = scalar_select 0, %s10, %s8
  $region1: #{tpu_custom_call.1} parent=0
    #allocation4 [shape = 'u8[32768]{0}', space=vmem, size = 0x8000, scoped, tag = 'input window, operand 0, single buffered']
    #allocation5 [shape = 's32[1]{0}', space=sflag, size = 0x4, scoped, tag = 'scoped memory for tpu_custom_call.1']
    #allocation6 [shape = 's32[1]{0}', space=sflag, size = 0x4, scoped, tag = 'scoped memory for tpu_custom_call.1']
    #allocation7 [shape = 'u8[16384]{0}', space=vmem, size = 0x4000, scoped, tag = 'input window, operand 3, single buffered']
    #allocation8 [shape = 's32[1]{0}', space=sflag, size = 0x4, scoped, tag = 'scoped memory for tpu_custom_call.1']
    #allocation9 [shape = 'u8[16384]{0}', space=vmem, size = 0x4000, scoped, tag = 'input window, operand 5, single buffered']
    #allocation10 [shape = 'u8[32768]{0}', space=vmem, size = 0x8000, scoped, tag = 'output window, operand 0, single buffered']
    %12 = vsyncpa [#allocation5], 0
    %13 = vsyncpa [#allocation8], 0
    %14 = vsyncpa [#allocation6], 0
    // Predicated region
    $region2: #{tpu_custom_call.1} parent=1 // pred_check
      _
    $region3: #{tpu_custom_call.1} parent=1 // pred_check_branch
      %16 = sbr.rel (0) target = $region5
    $region4: #{tpu_custom_call.1} parent=1 // pred_region
      %s18 = ssub.s32 1024, 1024
      %19 = vsyncadd [#allocation5], %s18
      %s20 = sshll.u32 [#allocation4], 4
      %s21 = int_to_ptr.vmem [resolvable:$true] %s20
      %26 = dma.hbm_to_vmem [thread:$0]  %s0, 1024, %s21, [#allocation5], 128, 128, 8
    $region5: #{tpu_custom_call.1} parent=1 // pred_fallthru
      _
    // Predicated region
    $region6: #{tpu_custom_call.1} parent=1 // pred_check
      _
    $region7: #{tpu_custom_call.1} parent=1 // pred_check_branch
      %28 = sbr.rel (0) target = $region9
    $region8: #{tpu_custom_call.1} parent=1 // pred_region
      _
    $region9: #{tpu_custom_call.1} parent=1 // pred_fallthru
      _
    // Predicated region
    $region10: #{tpu_custom_call.1} parent=1 // pred_check
      _
    $region11: #{tpu_custom_call.1} parent=1 // pred_check_branch
      %30 = sbr.rel (0) target = $region13
    $region12: #{tpu_custom_call.1} parent=1 // pred_region
      _
    $region13: #{tpu_custom_call.1} parent=1 // pred_fallthru
      _
    // Predicated region
    $region14: #{tpu_custom_call.1} parent=1 // pred_check
      _
    $region15: #{tpu_custom_call.1} parent=1 // pred_check_branch
      %32 = sbr.rel (0) target = $region17
    $region16: #{tpu_custom_call.1} parent=1 // pred_region
      %s34 = ssub.s32 512, 512
      %35 = vsyncadd [#allocation8], %s34
      %s36 = sshll.u32 [#allocation7], 4
      %s37 = int_to_ptr.vmem [resolvable:$true] %s36
      %42 = dma.hbm_to_vmem [thread:$0]  %s3, 512, %s37, [#allocation8], 128, 128, 8
    $region17: #{tpu_custom_call.1} parent=1 // pred_fallthru
      _
    // Predicated region
    $region18: #{tpu_custom_call.1} parent=1 // pred_check
      _
    $region19: #{tpu_custom_call.1} parent=1 // pred_check_branch
      %44 = sbr.rel (0) target = $region21
    $region20: #{tpu_custom_call.1} parent=1 // pred_region
      _
    $region21: #{tpu_custom_call.1} parent=1 // pred_fallthru
      _
    // Predicated region
    $region22: #{tpu_custom_call.1} parent=1 // pred_check
      _
    $region23: #{tpu_custom_call.1} parent=1 // pred_check_branch
      %46 = sbr.rel (0) target = $region25
    $region24: #{tpu_custom_call.1} parent=1 // pred_region
      %s48 = ssub.s32 512, 512
      %49 = vsyncadd [#allocation8], %s48
      %s50 = sshll.u32 [#allocation9], 4
      %s51 = int_to_ptr.vmem [resolvable:$true] %s50
      %56 = dma.hbm_to_vmem [thread:$0]  %s5, 512, %s51, [#allocation8], 128, 128, 8
    $region25: #{tpu_custom_call.1} parent=1 // pred_fallthru
      _
    // Predicated region
    $region26: #{tpu_custom_call.1} parent=1 // pred_check
      _
    $region27: #{tpu_custom_call.1} parent=1 // pred_check_branch
      %58 = sbr.rel (0) target = $region29
    $region28: #{tpu_custom_call.1} parent=1 // pred_region
      _
    $region29: #{tpu_custom_call.1} parent=1 // pred_fallthru
      _
    // Predicated region
    $region30: #{tpu_custom_call.1} parent=1 // pred_check
      _
    $region31: #{tpu_custom_call.1} parent=1 // pred_check_branch
      %60 = sbr.rel (0) target = $region33
    $region32: #{tpu_custom_call.1} parent=1 // pred_region
      %61 = dma.done [#allocation5], 1024
    $region33: #{tpu_custom_call.1} parent=1 // pred_fallthru
      _
    // Predicated region
    $region34: #{tpu_custom_call.1} parent=1 // pred_check
      _
    $region35: #{tpu_custom_call.1} parent=1 // pred_check_branch
      %63 = sbr.rel (0) target = $region37
    $region36: #{tpu_custom_call.1} parent=1 // pred_region
      %64 = dma.done [#allocation8], 512
    $region37: #{tpu_custom_call.1} parent=1 // pred_fallthru
      _
    // Predicated region
    $region38: #{tpu_custom_call.1} parent=1 // pred_check
      _
    $region39: #{tpu_custom_call.1} parent=1 // pred_check_branch
      %66 = sbr.rel (0) target = $region41
    $region40: #{tpu_custom_call.1} parent=1 // pred_region
      %67 = dma.done [#allocation8], 512
    $region41: #{tpu_custom_call.1} parent=1 // pred_fallthru
      _
    %v68 = vld [vmem:[#allocation4] sm:$0xff]
    %v69 = vld [vmem:[#allocation4 + $0x8] sm:$0xff]
    %v70 = vld [vmem:[#allocation4 + $0x10] sm:$0xff]
    %v71 = vld [vmem:[#allocation4 + $0x18] sm:$0xff]
    %v72 = vld [vmem:[#allocation4 + $0x20] sm:$0xff]
    %v73 = vld [vmem:[#allocation4 + $0x28] sm:$0xff]
    %v74 = vld [vmem:[#allocation4 + $0x30] sm:$0xff]
    %v75 = vld [vmem:[#allocation4 + $0x38] sm:$0xff]
    %v76 = vld [vmem:[%s2] sm:$0xff]
    %v77 = vld [vmem:[%s2 + $0x8] sm:$0xff]
    %v78 = vld [vmem:[%s4] sm:$0x1]
    %v80 = vlaneseq
    %v81 = vshrl.u32 %v80, 7
    %v82 = vsub.s32 0, %v81
    %v83 = vrot.slane %v78, %v82
    %vm85 = vcmask 130048
    %v87 = vsel %vm85, %v68, 0
    %v90 = vsel %vm85, %v69, 0
    %v93 = vsel %vm85, %v70, 0
    %v96 = vsel %vm85, %v71, 0
    %v99 = vsel %vm85, %v72, 0
    %v102 = vsel %vm85, %v73, 0
    %v105 = vsel %vm85, %v74, 0
    %v108 = vsel %vm85, %v75, 0
    %110 = vmatprep.subr.mxu0 0.0
    %111 = vmatpush1.msra.mxu0 %v76
    %112 = vmatprep.subr.mxu0 0.0
    %113 = vmatpush1.msra.mxu0 %v77
    %114 = vmatprep.subr.mxu0 0.0
    %115 = vmatpush1.msra.mxu0 0.0
    %116 = vmatprep.subr.mxu0 0.0
    %117 = vmatpush1.msra.mxu0 0.0
    %118 = vmatprep.subr.mxu0 0.0
    %119 = vmatpush1.msra.mxu0 0.0
    %120 = vmatprep.subr.mxu0 0.0
    %121 = vmatpush1.msra.mxu0 0.0
    %122 = vmatprep.subr.mxu0 0.0
    %123 = vmatpush1.msra.mxu0 0.0
    %124 = vmatprep.subr.mxu0 0.0
    %125 = vmatpush1.msra.mxu0 0.0
    %126 = vmatprep.subr.mxu0 0.0
    %127 = vmatpush1.msra.mxu0 0.0
    %128 = vmatprep.subr.mxu0 0.0
    %129 = vmatpush1.msra.mxu0 0.0
    %130 = vmatprep.subr.mxu0 0.0
    %131 = vmatpush1.msra.mxu0 0.0
    %132 = vmatprep.subr.mxu0 0.0
    %133 = vmatpush1.msra.mxu0 0.0
    %134 = vmatprep.subr.mxu0 0.0
    %135 = vmatpush1.msra.mxu0 0.0
    %136 = vmatprep.subr.mxu0 0.0
    %137 = vmatpush1.msra.mxu0 0.0
    %138 = vmatprep.subr.mxu0 0.0
    %139 = vmatpush1.msra.mxu0 0.0
    %140 = vmatprep.subr.mxu0 0.0
    %141 = vmatpush1.msra.mxu0 0.0
    %142 = vmatprep.subr.mxu0 0.0
    %143 = vmatpush1.msra.mxu0 0.0
    %144 = vmatprep.subr.mxu0 0.0
    %145 = vmatpush1.msra.mxu0 0.0
    %146 = vmatprep.subr.mxu0 0.0
    %147 = vmatpush1.msra.mxu0 0.0
    %148 = vmatprep.subr.mxu0 0.0
    %149 = vmatpush1.msra.mxu0 0.0
    %150 = vmatprep.subr.mxu0 0.0
    %151 = vmatpush1.msra.mxu0 0.0
    %152 = vmatprep.subr.mxu0 0.0
    %153 = vmatpush1.msra.mxu0 0.0
    %154 = vmatprep.subr.mxu0 0.0
    %155 = vmatpush1.msra.mxu0 0.0
    %156 = vmatprep.subr.mxu0 0.0
    %157 = vmatpush1.msra.mxu0 0.0
    %158 = vmatprep.subr.mxu0 0.0
    %159 = vmatpush1.msra.mxu0 0.0
    %160 = vmatprep.subr.mxu0 0.0
    %161 = vmatpush1.msra.mxu0 0.0
    %162 = vmatprep.subr.mxu0 0.0
    %163 = vmatpush1.msra.mxu0 0.0
    %164 = vmatprep.subr.mxu0 0.0
    %165 = vmatpush1.msra.mxu0 0.0
    %166 = vmatprep.subr.mxu0 0.0
    %167 = vmatpush1.msra.mxu0 0.0
    %168 = vmatprep.subr.mxu0 0.0
    %169 = vmatpush1.msra.mxu0 0.0
    %170 = vmatprep.subr.mxu0 0.0
    %171 = vmatpush1.msra.mxu0 0.0
    %172 = vmatprep.subr.mxu0 0.0
    %173 = vmatpush1.msra.mxu0 0.0
    %174 = vmatprep.mubr.f32.mxu0 0.0
    %175 = vmatmul.mubr.f32.gmra.mrb[0].mxu0 %v87
    %v176 = vpop.f32.mrb[0].mxu0
    %v177 = vadd.f32 %v83, %v176
    %v178 = vpop.f32.mrb[0].mxu0
    %179 = vmatprep.mubr.f32.mxu0 0.0
    %180 = vmatmul.mubr.f32.gmra.mrb[0].mxu0 %v90
    %v181 = vpop.f32.mrb[0].mxu0
    %v182 = vadd.f32 %v83, %v181
    %v183 = vpop.f32.mrb[0].mxu0
    %184 = vmatprep.mubr.f32.mxu0 0.0
    %185 = vmatmul.mubr.f32.gmra.mrb[0].mxu0 %v93
    %v186 = vpop.f32.mrb[0].mxu0
    %v187 = vadd.f32 %v83, %v186
    %v188 = vpop.f32.mrb[0].mxu0
    %189 = vmatprep.mubr.f32.mxu0 0.0
    %190 = vmatmul.mubr.f32.gmra.mrb[0].mxu0 %v96
    %v191 = vpop.f32.mrb[0].mxu0
    %v192 = vadd.f32 %v83, %v191
    %v193 = vpop.f32.mrb[0].mxu0
    %194 = vmatprep.mubr.f32.mxu0 0.0
    %195 = vmatmul.mubr.f32.gmra.mrb[0].mxu0 %v99
    %v196 = vpop.f32.mrb[0].mxu0
    %v197 = vadd.f32 %v83, %v196
    %v198 = vpop.f32.mrb[0].mxu0
    %199 = vmatprep.mubr.f32.mxu0 0.0
    %200 = vmatmul.mubr.f32.gmra.mrb[0].mxu0 %v102
    %v201 = vpop.f32.mrb[0].mxu0
    %v202 = vadd.f32 %v83, %v201
    %v203 = vpop.f32.mrb[0].mxu0
    %204 = vmatprep.mubr.f32.mxu0 0.0
    %205 = vmatmul.mubr.f32.gmra.mrb[0].mxu0 %v105
    %v206 = vpop.f32.mrb[0].mxu0
    %v207 = vadd.f32 %v83, %v206
    %v208 = vpop.f32.mrb[0].mxu0
    %209 = vmatprep.mubr.f32.mxu0 0.0
    %210 = vmatmul.mubr.f32.gmra.mrb[0].mxu0 %v108
    %v211 = vpop.f32.mrb[0].mxu0
    %v212 = vadd.f32 %v83, %v211
    %v213 = vpop.f32.mrb[0].mxu0
    %214 = vdwg.mxu0
    %215 = vst [vmem:[#allocation2] sm:$0xff] %v177
    %216 = vst [vmem:[#allocation2 + $0x8] sm:$0xff] %v182
    %217 = vst [vmem:[#allocation2 + $0x10] sm:$0xff] %v187
    %218 = vst [vmem:[#allocation2 + $0x18] sm:$0xff] %v192
    %219 = vst [vmem:[#allocation2 + $0x20] sm:$0xff] %v197
    %220 = vst [vmem:[#allocation2 + $0x28] sm:$0xff] %v202
    %221 = vst [vmem:[#allocation2 + $0x30] sm:$0xff] %v207
    %222 = vst [vmem:[#allocation2 + $0x38] sm:$0xff] %v212
    %v223 = vld [vmem:[#allocation7] sm:$0xff]
    %v224 = vld [vmem:[#allocation7 + $0x8] sm:$0xff]
    %v225 = vld [vmem:[#allocation7 + $0x10] sm:$0xff]
    %v226 = vld [vmem:[#allocation7 + $0x18] sm:$0xff]
    %v227 = vld [vmem:[%s1] sm:$0xff]
    %v228 = vlaneseq
    %v229 = vand.u32 %v228, 127
    %vm230 = vcmp.ge.s32.totalorder %v229, 64
    %vm231 = vcmp.lt.s32.totalorder %v229, 96
    %vm232 = vmand %vm230, %vm231
    %v233 = vld [vmem:[#allocation2] sm:$0xff]
    %vm234 = vcmask 261120
    %v236 = vsel %vm234, 0.0, 0
    %238 = vmatprep.subr.mxu0 0.0
    %239 = vmatpush1.msra.mxu0 %v223
    %240 = vmatprep.subr.mxu0 0.0
    %241 = vmatpush1.msra.mxu0 %v224
    %242 = vmatprep.subr.mxu0 0.0
    %243 = vmatpush1.msra.mxu0 %v225
    %244 = vmatprep.subr.mxu0 0.0
    %245 = vmatpush1.msra.mxu0 %v226
    %246 = vmatprep.subr.mxu0 0.0
    %247 = vmatpush1.msra.mxu0 0.0
    %248 = vmatprep.subr.mxu0 0.0
    %249 = vmatpush1.msra.mxu0 0.0
    %250 = vmatprep.subr.mxu0 0.0
    %251 = vmatpush1.msra.mxu0 0.0
    %252 = vmatprep.subr.mxu0 0.0
    %253 = vmatpush1.msra.mxu0 0.0
    %254 = vmatprep.subr.mxu0 0.0
    %255 = vmatpush1.msra.mxu0 0.0
    %256 = vmatprep.subr.mxu0 0.0
    %257 = vmatpush1.msra.mxu0 0.0
    %258 = vmatprep.subr.mxu0 0.0
    %259 = vmatpush1.msra.mxu0 0.0
    %260 = vmatprep.subr.mxu0 0.0
    %261 = vmatpush1.msra.mxu0 0.0
    %262 = vmatprep.subr.mxu0 0.0
    %263 = vmatpush1.msra.mxu0 0.0
    %264 = vmatprep.subr.mxu0 0.0
    %265 = vmatpush1.msra.mxu0 0.0
    %266 = vmatprep.subr.mxu0 0.0
    %267 = vmatpush1.msra.mxu0 0.0
    %268 = vmatprep.subr.mxu0 0.0
    %269 = vmatpush1.msra.mxu0 0.0
    %270 = vmatprep.subr.mxu0 0.0
    %271 = vmatpush1.msra.mxu0 0.0
    %272 = vmatprep.subr.mxu0 0.0
    %273 = vmatpush1.msra.mxu0 0.0
    %274 = vmatprep.subr.mxu0 0.0
    %275 = vmatpush1.msra.mxu0 0.0
    %276 = vmatprep.subr.mxu0 0.0
    %277 = vmatpush1.msra.mxu0 0.0
    %278 = vmatprep.subr.mxu0 0.0
    %279 = vmatpush1.msra.mxu0 0.0
    %280 = vmatprep.subr.mxu0 0.0
    %281 = vmatpush1.msra.mxu0 0.0
    %282 = vmatprep.subr.mxu0 0.0
    %283 = vmatpush1.msra.mxu0 0.0
    %284 = vmatprep.subr.mxu0 0.0
    %285 = vmatpush1.msra.mxu0 0.0
    %286 = vmatprep.subr.mxu0 0.0
    %287 = vmatpush1.msra.mxu0 0.0
    %288 = vmatprep.subr.mxu0 0.0
    %289 = vmatpush1.msra.mxu0 0.0
    %290 = vmatprep.subr.mxu0 0.0
    %291 = vmatpush1.msra.mxu0 0.0
    %292 = vmatprep.subr.mxu0 0.0
    %293 = vmatpush1.msra.mxu0 0.0
    %294 = vmatprep.subr.mxu0 0.0
    %295 = vmatpush1.msra.mxu0 0.0
    %296 = vmatprep.subr.mxu0 0.0
    %297 = vmatpush1.msra.mxu0 0.0
    %298 = vmatprep.subr.mxu0 0.0
    %299 = vmatpush1.msra.mxu0 0.0
    %300 = vmatprep.subr.mxu0 0.0
    %301 = vmatpush1.msra.mxu0 0.0
    %302 = vmatprep.mubr.f32.mxu0 0.0
    %303 = vmatmul.mubr.f32.gmra.mrb[0].mxu0 %v236
    %v304 = vpop.f32.mrb[0].mxu0
    %v305 = vadd.f32 0.0, %v304
    %v306 = vpop.f32.mrb[0].mxu0
    %307 = vdwg.mxu0
    %v308 = vadd.f32 %v233, %v305
    %v309 = vtanh.pop %v308
    %v310 = vxor.u32 %v308, 2147483648
    %v311 = vmul.f32 %v310, 1.442695
    %v312 = vpow.pop %v311
    %v313 = vadd.f32 %v312, 1.0
    %v314 = vrcp.pop %v313
    %v315 = vmul.f32 1.0, %v314
    %v316 = vsel %vm232, %v309, %v315
    %vm317 = vcmp.gt.s32.totalorder %v227, 0
    %v318 = vmul.f32 %v316, 0.0
    %320 = vrot.lane.b32.xlu0 %v316, 64
    %v321 = vpop.permute.xlu0 %320
    %v323 = vmul.f32 %v316, %v321
    %325 = vrot.lane.b32.xlu0 %v323, 32
    %v326 = vpop.permute.xlu0 %325
    %v328 = vadd.f32 %v318, %v326
    %v329 = vsel %vm317, 1, 0
    %330 = vset.pattern.permute.xlu0 0
    %331 = vperm.xlu0 %330, %v329
    %v332 = vpop.permute.xlu0 %331
    %vm333 = vcmp.eq.s32.totalorder %v332, 1
    %v334 = vsel %vm333, %v328, 0.0
    %v335 = vtanh.pop %v334
    %337 = vrot.lane.b32.xlu0 %v335, 64
    %v338 = vpop.permute.xlu0 %337
    %v340 = vmul.f32 %v316, %v338
    %v341 = vsel %vm333, %v340, 0.0
    %343 = vrot.lane.b32.xlu0 %v341, 32
    %v344 = vpop.permute.xlu0 %343
    %346 = vst.msk [vmem:[#allocation3] sm:$0xff] %vm234, %v344
    %s347 = scalar_lea.vmem [#allocation2], 8
    %v348 = vld [vmem:[%s347] sm:$0xff]
    %v349 = vsel %vm234, %v344, 0
    %351 = vmatprep.subr.mxu0 0.0
    %352 = vmatpush1.msra.mxu0 %v223
    %353 = vmatprep.subr.mxu0 0.0
    %354 = vmatpush1.msra.mxu0 %v224
    %355 = vmatprep.subr.mxu0 0.0
    %356 = vmatpush1.msra.mxu0 %v225
    %357 = vmatprep.subr.mxu0 0.0
    %358 = vmatpush1.msra.mxu0 %v226
    %359 = vmatprep.subr.mxu0 0.0
    %360 = vmatpush1.msra.mxu0 0.0
    %361 = vmatprep.subr.mxu0 0.0
    %362 = vmatpush1.msra.mxu0 0.0
    %363 = vmatprep.subr.mxu0 0.0
    %364 = vmatpush1.msra.mxu0 0.0
    %365 = vmatprep.subr.mxu0 0.0
    %366 = vmatpush1.msra.mxu0 0.0
    %367 = vmatprep.subr.mxu0 0.0
    %368 = vmatpush1.msra.mxu0 0.0
    %369 = vmatprep.subr.mxu0 0.0
    %370 = vmatpush1.msra.mxu0 0.0
    %371 = vmatprep.subr.mxu0 0.0
    %372 = vmatpush1.msra.mxu0 0.0
    %373 = vmatprep.subr.mxu0 0.0
    %374 = vmatpush1.msra.mxu0 0.0
    %375 = vmatprep.subr.mxu0 0.0
    %376 = vmatpush1.msra.mxu0 0.0
    %377 = vmatprep.subr.mxu0 0.0
    %378 = vmatpush1.msra.mxu0 0.0
    %379 = vmatprep.subr.mxu0 0.0
    %380 = vmatpush1.msra.mxu0 0.0
    %381 = vmatprep.subr.mxu0 0.0
    %382 = vmatpush1.msra.mxu0 0.0
    %383 = vmatprep.subr.mxu0 0.0
    %384 = vmatpush1.msra.mxu0 0.0
    %385 = vmatprep.subr.mxu0 0.0
    %386 = vmatpush1.msra.mxu0 0.0
    %387 = vmatprep.subr.mxu0 0.0
    %388 = vmatpush1.msra.mxu0 0.0
    %389 = vmatprep.subr.mxu0 0.0
    %390 = vmatpush1.msra.mxu0 0.0
    %391 = vmatprep.subr.mxu0 0.0
    %392 = vmatpush1.msra.mxu0 0.0
    %393 = vmatprep.subr.mxu0 0.0
    %394 = vmatpush1.msra.mxu0 0.0
    %395 = vmatprep.subr.mxu0 0.0
    %396 = vmatpush1.msra.mxu0 0.0
    %397 = vmatprep.subr.mxu0 0.0
    %398 = vmatpush1.msra.mxu0 0.0
    %399 = vmatprep.subr.mxu0 0.0
    %400 = vmatpush1.msra.mxu0 0.0
    %401 = vmatprep.subr.mxu0 0.0
    %402 = vmatpush1.msra.mxu0 0.0
    %403 = vmatprep.subr.mxu0 0.0
    %404 = vmatpush1.msra.mxu0 0.0
    %405 = vmatprep.subr.mxu0 0.0
    %406 = vmatpush1.msra.mxu0 0.0
    %407 = vmatprep.subr.mxu0 0.0
    %408 = vmatpush1.msra.mxu0 0.0
    %409 = vmatprep.subr.mxu0 0.0
    %410 = vmatpush1.msra.mxu0 0.0
    %411 = vmatprep.subr.mxu0 0.0
    %412 = vmatpush1.msra.mxu0 0.0
    %413 = vmatprep.subr.mxu0 0.0
    %414 = vmatpush1.msra.mxu0 0.0
    %415 = vmatprep.mubr.f32.mxu0 0.0
    %416 = vmatmul.mubr.f32.gmra.mrb[0].mxu0 %v349
    %v417 = vpop.f32.mrb[0].mxu0
    %v418 = vadd.f32 0.0, %v417
    %v419 = vpop.f32.mrb[0].mxu0
    %420 = vdwg.mxu0
    %v421 = vadd.f32 %v348, %v418
    %v422 = vtanh.pop %v421
    %v423 = vxor.u32 %v421, 2147483648
    %v424 = vmul.f32 %v423, 1.442695
    %v425 = vpow.pop %v424
    %v426 = vadd.f32 %v425, 1.0
    %v427 = vrcp.pop %v426
    %v428 = vmul.f32 1.0, %v427
    %v429 = vsel %vm232, %v422, %v428
    %vm430 = vcmp.gt.s32.totalorder %v227, 1
    %v431 = vmul.f32 %v429, %v334
    %433 = vrot.lane.b32.xlu0 %v429, 64
    %v434 = vpop.permute.xlu0 %433
    %v436 = vmul.f32 %v429, %v434
    %438 = vrot.lane.b32.xlu0 %v436, 32
    %v439 = vpop.permute.xlu0 %438
    %v441 = vadd.f32 %v431, %v439
    %v442 = vsel %vm430, 1, 0
    %443 = vset.pattern.permute.xlu0 0
    %444 = vperm.xlu0 %443, %v442
    %v445 = vpop.permute.xlu0 %444
    %vm446 = vcmp.eq.s32.totalorder %v445, 1
    %v447 = vsel %vm446, %v441, %v334
    %v448 = vtanh.pop %v447
    %450 = vrot.lane.b32.xlu0 %v448, 64
    %v451 = vpop.permute.xlu0 %450
    %v453 = vmul.f32 %v429, %v451
    %v454 = vsel %vm446, %v453, %v341
    %v455 = vsel %vm446, %v453, 0.0
    %457 = vrot.lane.b32.xlu0 %v455, 32
    %v458 = vpop.permute.xlu0 %457
    %s460 = scalar_lea.vmem [#allocation3], 8
    %461 = vst.msk [vmem:[%s460] sm:$0xff] %vm234, %v458
    %s462 = scalar_lea.vmem [#allocation2], 16
    %v463 = vld [vmem:[%s462] sm:$0xff]
    %465 = vrot.lane.b32.xlu0 %v454, 32
    %v466 = vpop.permute.xlu0 %465
    %v467 = vsel %vm234, %v466, 0
    %469 = vmatprep.subr.mxu0 0.0
    %470 = vmatpush1.msra.mxu0 %v223
    %471 = vmatprep.subr.mxu0 0.0
    %472 = vmatpush1.msra.mxu0 %v224
    %473 = vmatprep.subr.mxu0 0.0
    %474 = vmatpush1.msra.mxu0 %v225
    %475 = vmatprep.subr.mxu0 0.0
    %476 = vmatpush1.msra.mxu0 %v226
    %477 = vmatprep.subr.mxu0 0.0
    %478 = vmatpush1.msra.mxu0 0.0
    %479 = vmatprep.subr.mxu0 0.0
    %480 = vmatpush1.msra.mxu0 0.0
    %481 = vmatprep.subr.mxu0 0.0
    %482 = vmatpush1.msra.mxu0 0.0
    %483 = vmatprep.subr.mxu0 0.0
    %484 = vmatpush1.msra.mxu0 0.0
    %485 = vmatprep.subr.mxu0 0.0
    %486 = vmatpush1.msra.mxu0 0.0
    %487 = vmatprep.subr.mxu0 0.0
    %488 = vmatpush1.msra.mxu0 0.0
    %489 = vmatprep.subr.mxu0 0.0
    %490 = vmatpush1.msra.mxu0 0.0
    %491 = vmatprep.subr.mxu0 0.0
    %492 = vmatpush1.msra.mxu0 0.0
    %493 = vmatprep.subr.mxu0 0.0
    %494 = vmatpush1.msra.mxu0 0.0
    %495 = vmatprep.subr.mxu0 0.0
    %496 = vmatpush1.msra.mxu0 0.0
    %497 = vmatprep.subr.mxu0 0.0
    %498 = vmatpush1.msra.mxu0 0.0
    %499 = vmatprep.subr.mxu0 0.0
    %500 = vmatpush1.msra.mxu0 0.0
    %501 = vmatprep.subr.mxu0 0.0
    %502 = vmatpush1.msra.mxu0 0.0
    %503 = vmatprep.subr.mxu0 0.0
    %504 = vmatpush1.msra.mxu0 0.0
    %505 = vmatprep.subr.mxu0 0.0
    %506 = vmatpush1.msra.mxu0 0.0
    %507 = vmatprep.subr.mxu0 0.0
    %508 = vmatpush1.msra.mxu0 0.0
    %509 = vmatprep.subr.mxu0 0.0
    %510 = vmatpush1.msra.mxu0 0.0
    %511 = vmatprep.subr.mxu0 0.0
    %512 = vmatpush1.msra.mxu0 0.0
    %513 = vmatprep.subr.mxu0 0.0
    %514 = vmatpush1.msra.mxu0 0.0
    %515 = vmatprep.subr.mxu0 0.0
    %516 = vmatpush1.msra.mxu0 0.0
    %517 = vmatprep.subr.mxu0 0.0
    %518 = vmatpush1.msra.mxu0 0.0
    %519 = vmatprep.subr.mxu0 0.0
    %520 = vmatpush1.msra.mxu0 0.0
    %521 = vmatprep.subr.mxu0 0.0
    %522 = vmatpush1.msra.mxu0 0.0
    %523 = vmatprep.subr.mxu0 0.0
    %524 = vmatpush1.msra.mxu0 0.0
    %525 = vmatprep.subr.mxu0 0.0
    %526 = vmatpush1.msra.mxu0 0.0
    %527 = vmatprep.subr.mxu0 0.0
    %528 = vmatpush1.msra.mxu0 0.0
    %529 = vmatprep.subr.mxu0 0.0
    %530 = vmatpush1.msra.mxu0 0.0
    %531 = vmatprep.subr.mxu0 0.0
    %532 = vmatpush1.msra.mxu0 0.0
    %533 = vmatprep.mubr.f32.mxu0 0.0
    %534 = vmatmul.mubr.f32.gmra.mrb[0].mxu0 %v467
    %v535 = vpop.f32.mrb[0].mxu0
    %v536 = vadd.f32 0.0, %v535
    %v537 = vpop.f32.mrb[0].mxu0
    %538 = vdwg.mxu0
    %v539 = vadd.f32 %v463, %v536
    %v540 = vtanh.pop %v539
    %v541 = vxor.u32 %v539, 2147483648
    %v542 = vmul.f32 %v541, 1.442695
    %v543 = vpow.pop %v542
    %v544 = vadd.f32 %v543, 1.0
    %v545 = vrcp.pop %v544
    %v546 = vmul.f32 1.0, %v545
    %v547 = vsel %vm232, %v540, %v546
    %vm548 = vcmp.gt.s32.totalorder %v227, 2
    %v549 = vmul.f32 %v547, %v447
    %551 = vrot.lane.b32.xlu0 %v547, 64
    %v552 = vpop.permute.xlu0 %551
    %v554 = vmul.f32 %v547, %v552
    %556 = vrot.lane.b32.xlu0 %v554, 32
    %v557 = vpop.permute.xlu0 %556
    %v559 = vadd.f32 %v549, %v557
    %v560 = vsel %vm548, 1, 0
    %561 = vset.pattern.permute.xlu0 0
    %562 = vperm.xlu0 %561, %v560
    %v563 = vpop.permute.xlu0 %562
    %vm564 = vcmp.eq.s32.totalorder %v563, 1
    %v565 = vsel %vm564, %v559, %v447
    %v566 = vtanh.pop %v565
    %568 = vrot.lane.b32.xlu0 %v566, 64
    %v569 = vpop.permute.xlu0 %568
    %v571 = vmul.f32 %v547, %v569
    %v572 = vsel %vm564, %v571, %v454
    %v573 = vsel %vm564, %v571, 0.0
    %575 = vrot.lane.b32.xlu0 %v573, 32
    %v576 = vpop.permute.xlu0 %575
    %s578 = scalar_lea.vmem [#allocation3], 16
    %579 = vst.msk [vmem:[%s578] sm:$0xff] %vm234, %v576
    %s580 = scalar_lea.vmem [#allocation2], 24
    %v581 = vld [vmem:[%s580] sm:$0xff]
    %583 = vrot.lane.b32.xlu0 %v572, 32
    %v584 = vpop.permute.xlu0 %583
    %v585 = vsel %vm234, %v584, 0
    %587 = vmatprep.subr.mxu0 0.0
    %588 = vmatpush1.msra.mxu0 %v223
    %589 = vmatprep.subr.mxu0 0.0
    %590 = vmatpush1.msra.mxu0 %v224
    %591 = vmatprep.subr.mxu0 0.0
    %592 = vmatpush1.msra.mxu0 %v225
    %593 = vmatprep.subr.mxu0 0.0
    %594 = vmatpush1.msra.mxu0 %v226
    %595 = vmatprep.subr.mxu0 0.0
    %596 = vmatpush1.msra.mxu0 0.0
    %597 = vmatprep.subr.mxu0 0.0
    %598 = vmatpush1.msra.mxu0 0.0
    %599 = vmatprep.subr.mxu0 0.0
    %600 = vmatpush1.msra.mxu0 0.0
    %601 = vmatprep.subr.mxu0 0.0
    %602 = vmatpush1.msra.mxu0 0.0
    %603 = vmatprep.subr.mxu0 0.0
    %604 = vmatpush1.msra.mxu0 0.0
    %605 = vmatprep.subr.mxu0 0.0
    %606 = vmatpush1.msra.mxu0 0.0
    %607 = vmatprep.subr.mxu0 0.0
    %608 = vmatpush1.msra.mxu0 0.0
    %609 = vmatprep.subr.mxu0 0.0
    %610 = vmatpush1.msra.mxu0 0.0
    %611 = vmatprep.subr.mxu0 0.0
    %612 = vmatpush1.msra.mxu0 0.0
    %613 = vmatprep.subr.mxu0 0.0
    %614 = vmatpush1.msra.mxu0 0.0
    %615 = vmatprep.subr.mxu0 0.0
    %616 = vmatpush1.msra.mxu0 0.0
    %617 = vmatprep.subr.mxu0 0.0
    %618 = vmatpush1.msra.mxu0 0.0
    %619 = vmatprep.subr.mxu0 0.0
    %620 = vmatpush1.msra.mxu0 0.0
    %621 = vmatprep.subr.mxu0 0.0
    %622 = vmatpush1.msra.mxu0 0.0
    %623 = vmatprep.subr.mxu0 0.0
    %624 = vmatpush1.msra.mxu0 0.0
    %625 = vmatprep.subr.mxu0 0.0
    %626 = vmatpush1.msra.mxu0 0.0
    %627 = vmatprep.subr.mxu0 0.0
    %628 = vmatpush1.msra.mxu0 0.0
    %629 = vmatprep.subr.mxu0 0.0
    %630 = vmatpush1.msra.mxu0 0.0
    %631 = vmatprep.subr.mxu0 0.0
    %632 = vmatpush1.msra.mxu0 0.0
    %633 = vmatprep.subr.mxu0 0.0
    %634 = vmatpush1.msra.mxu0 0.0
    %635 = vmatprep.subr.mxu0 0.0
    %636 = vmatpush1.msra.mxu0 0.0
    %637 = vmatprep.subr.mxu0 0.0
    %638 = vmatpush1.msra.mxu0 0.0
    %639 = vmatprep.subr.mxu0 0.0
    %640 = vmatpush1.msra.mxu0 0.0
    %641 = vmatprep.subr.mxu0 0.0
    %642 = vmatpush1.msra.mxu0 0.0
    %643 = vmatprep.subr.mxu0 0.0
    %644 = vmatpush1.msra.mxu0 0.0
    %645 = vmatprep.subr.mxu0 0.0
    %646 = vmatpush1.msra.mxu0 0.0
    %647 = vmatprep.subr.mxu0 0.0
    %648 = vmatpush1.msra.mxu0 0.0
    %649 = vmatprep.subr.mxu0 0.0
    %650 = vmatpush1.msra.mxu0 0.0
    %651 = vmatprep.mubr.f32.mxu0 0.0
    %652 = vmatmul.mubr.f32.gmra.mrb[0].mxu0 %v585
    %v653 = vpop.f32.mrb[0].mxu0
    %v654 = vadd.f32 0.0, %v653
    %v655 = vpop.f32.mrb[0].mxu0
    %656 = vdwg.mxu0
    %v657 = vadd.f32 %v581, %v654
    %v658 = vtanh.pop %v657
    %v659 = vxor.u32 %v657, 2147483648
    %v660 = vmul.f32 %v659, 1.442695
    %v661 = vpow.pop %v660
    %v662 = vadd.f32 %v661, 1.0
    %v663 = vrcp.pop %v662
    %v664 = vmul.f32 1.0, %v663
    %v665 = vsel %vm232, %v658, %v664
    %vm666 = vcmp.gt.s32.totalorder %v227, 3
    %v667 = vmul.f32 %v665, %v565
    %669 = vrot.lane.b32.xlu0 %v665, 64
    %v670 = vpop.permute.xlu0 %669
    %v672 = vmul.f32 %v665, %v670
    %674 = vrot.lane.b32.xlu0 %v672, 32
    %v675 = vpop.permute.xlu0 %674
    %v677 = vadd.f32 %v667, %v675
    %v678 = vsel %vm666, 1, 0
    %679 = vset.pattern.permute.xlu0 0
    %680 = vperm.xlu0 %679, %v678
    %v681 = vpop.permute.xlu0 %680
    %vm682 = vcmp.eq.s32.totalorder %v681, 1
    %v683 = vsel %vm682, %v677, %v565
    %v684 = vtanh.pop %v683
    %686 = vrot.lane.b32.xlu0 %v684, 64
    %v687 = vpop.permute.xlu0 %686
    %v689 = vmul.f32 %v665, %v687
    %v690 = vsel %vm682, %v689, %v572
    %v691 = vsel %vm682, %v689, 0.0
    %693 = vrot.lane.b32.xlu0 %v691, 32
    %v694 = vpop.permute.xlu0 %693
    %s696 = scalar_lea.vmem [#allocation3], 24
    %697 = vst.msk [vmem:[%s696] sm:$0xff] %vm234, %v694
    %s698 = scalar_lea.vmem [#allocation2], 32
    %v699 = vld [vmem:[%s698] sm:$0xff]
    %701 = vrot.lane.b32.xlu0 %v690, 32
    %v702 = vpop.permute.xlu0 %701
    %v703 = vsel %vm234, %v702, 0
    %705 = vmatprep.subr.mxu0 0.0
    %706 = vmatpush1.msra.mxu0 %v223
    %707 = vmatprep.subr.mxu0 0.0
    %708 = vmatpush1.msra.mxu0 %v224
    %709 = vmatprep.subr.mxu0 0.0
    %710 = vmatpush1.msra.mxu0 %v225
    %711 = vmatprep.subr.mxu0 0.0
    %712 = vmatpush1.msra.mxu0 %v226
    %713 = vmatprep.subr.mxu0 0.0
    %714 = vmatpush1.msra.mxu0 0.0
    %715 = vmatprep.subr.mxu0 0.0
    %716 = vmatpush1.msra.mxu0 0.0
    %717 = vmatprep.subr.mxu0 0.0
    %718 = vmatpush1.msra.mxu0 0.0
    %719 = vmatprep.subr.mxu0 0.0
    %720 = vmatpush1.msra.mxu0 0.0
    %721 = vmatprep.subr.mxu0 0.0
    %722 = vmatpush1.msra.mxu0 0.0
    %723 = vmatprep.subr.mxu0 0.0
    %724 = vmatpush1.msra.mxu0 0.0
    %725 = vmatprep.subr.mxu0 0.0
    %726 = vmatpush1.msra.mxu0 0.0
    %727 = vmatprep.subr.mxu0 0.0
    %728 = vmatpush1.msra.mxu0 0.0
    %729 = vmatprep.subr.mxu0 0.0
    %730 = vmatpush1.msra.mxu0 0.0
    %731 = vmatprep.subr.mxu0 0.0
    %732 = vmatpush1.msra.mxu0 0.0
    %733 = vmatprep.subr.mxu0 0.0
    %734 = vmatpush1.msra.mxu0 0.0
    %735 = vmatprep.subr.mxu0 0.0
    %736 = vmatpush1.msra.mxu0 0.0
    %737 = vmatprep.subr.mxu0 0.0
    %738 = vmatpush1.msra.mxu0 0.0
    %739 = vmatprep.subr.mxu0 0.0
    %740 = vmatpush1.msra.mxu0 0.0
    %741 = vmatprep.subr.mxu0 0.0
    %742 = vmatpush1.msra.mxu0 0.0
    %743 = vmatprep.subr.mxu0 0.0
    %744 = vmatpush1.msra.mxu0 0.0
    %745 = vmatprep.subr.mxu0 0.0
    %746 = vmatpush1.msra.mxu0 0.0
    %747 = vmatprep.subr.mxu0 0.0
    %748 = vmatpush1.msra.mxu0 0.0
    %749 = vmatprep.subr.mxu0 0.0
    %750 = vmatpush1.msra.mxu0 0.0
    %751 = vmatprep.subr.mxu0 0.0
    %752 = vmatpush1.msra.mxu0 0.0
    %753 = vmatprep.subr.mxu0 0.0
    %754 = vmatpush1.msra.mxu0 0.0
    %755 = vmatprep.subr.mxu0 0.0
    %756 = vmatpush1.msra.mxu0 0.0
    %757 = vmatprep.subr.mxu0 0.0
    %758 = vmatpush1.msra.mxu0 0.0
    %759 = vmatprep.subr.mxu0 0.0
    %760 = vmatpush1.msra.mxu0 0.0
    %761 = vmatprep.subr.mxu0 0.0
    %762 = vmatpush1.msra.mxu0 0.0
    %763 = vmatprep.subr.mxu0 0.0
    %764 = vmatpush1.msra.mxu0 0.0
    %765 = vmatprep.subr.mxu0 0.0
    %766 = vmatpush1.msra.mxu0 0.0
    %767 = vmatprep.subr.mxu0 0.0
    %768 = vmatpush1.msra.mxu0 0.0
    %769 = vmatprep.mubr.f32.mxu0 0.0
    %770 = vmatmul.mubr.f32.gmra.mrb[0].mxu0 %v703
    %v771 = vpop.f32.mrb[0].mxu0
    %v772 = vadd.f32 0.0, %v771
    %v773 = vpop.f32.mrb[0].mxu0
    %774 = vdwg.mxu0
    %v775 = vadd.f32 %v699, %v772
    %v776 = vtanh.pop %v775
    %v777 = vxor.u32 %v775, 2147483648
    %v778 = vmul.f32 %v777, 1.442695
    %v779 = vpow.pop %v778
    %v780 = vadd.f32 %v779, 1.0
    %v781 = vrcp.pop %v780
    %v782 = vmul.f32 1.0, %v781
    %v783 = vsel %vm232, %v776, %v782
    %vm784 = vcmp.gt.s32.totalorder %v227, 4
    %v785 = vmul.f32 %v783, %v683
    %787 = vrot.lane.b32.xlu0 %v783, 64
    %v788 = vpop.permute.xlu0 %787
    %v790 = vmul.f32 %v783, %v788
    %792 = vrot.lane.b32.xlu0 %v790, 32
    %v793 = vpop.permute.xlu0 %792
    %v795 = vadd.f32 %v785, %v793
    %v796 = vsel %vm784, 1, 0
    %797 = vset.pattern.permute.xlu0 0
    %798 = vperm.xlu0 %797, %v796
    %v799 = vpop.permute.xlu0 %798
    %vm800 = vcmp.eq.s32.totalorder %v799, 1
    %v801 = vsel %vm800, %v795, %v683
    %v802 = vtanh.pop %v801
    %804 = vrot.lane.b32.xlu0 %v802, 64
    %v805 = vpop.permute.xlu0 %804
    %v807 = vmul.f32 %v783, %v805
    %v808 = vsel %vm800, %v807, %v690
    %v809 = vsel %vm800, %v807, 0.0
    %811 = vrot.lane.b32.xlu0 %v809, 32
    %v812 = vpop.permute.xlu0 %811
    %s814 = scalar_lea.vmem [#allocation3], 32
    %815 = vst.msk [vmem:[%s814] sm:$0xff] %vm234, %v812
    %s816 = scalar_lea.vmem [#allocation2], 40
    %v817 = vld [vmem:[%s816] sm:$0xff]
    %819 = vrot.lane.b32.xlu0 %v808, 32
    %v820 = vpop.permute.xlu0 %819
    %v821 = vsel %vm234, %v820, 0
    %823 = vmatprep.subr.mxu0 0.0
    %824 = vmatpush1.msra.mxu0 %v223
    %825 = vmatprep.subr.mxu0 0.0
    %826 = vmatpush1.msra.mxu0 %v224
    %827 = vmatprep.subr.mxu0 0.0
    %828 = vmatpush1.msra.mxu0 %v225
    %829 = vmatprep.subr.mxu0 0.0
    %830 = vmatpush1.msra.mxu0 %v226
    %831 = vmatprep.subr.mxu0 0.0
    %832 = vmatpush1.msra.mxu0 0.0
    %833 = vmatprep.subr.mxu0 0.0
    %834 = vmatpush1.msra.mxu0 0.0
    %835 = vmatprep.subr.mxu0 0.0
    %836 = vmatpush1.msra.mxu0 0.0
    %837 = vmatprep.subr.mxu0 0.0
    %838 = vmatpush1.msra.mxu0 0.0
    %839 = vmatprep.subr.mxu0 0.0
    %840 = vmatpush1.msra.mxu0 0.0
    %841 = vmatprep.subr.mxu0 0.0
    %842 = vmatpush1.msra.mxu0 0.0
    %843 = vmatprep.subr.mxu0 0.0
    %844 = vmatpush1.msra.mxu0 0.0
    %845 = vmatprep.subr.mxu0 0.0
    %846 = vmatpush1.msra.mxu0 0.0
    %847 = vmatprep.subr.mxu0 0.0
    %848 = vmatpush1.msra.mxu0 0.0
    %849 = vmatprep.subr.mxu0 0.0
    %850 = vmatpush1.msra.mxu0 0.0
    %851 = vmatprep.subr.mxu0 0.0
    %852 = vmatpush1.msra.mxu0 0.0
    %853 = vmatprep.subr.mxu0 0.0
    %854 = vmatpush1.msra.mxu0 0.0
    %855 = vmatprep.subr.mxu0 0.0
    %856 = vmatpush1.msra.mxu0 0.0
    %857 = vmatprep.subr.mxu0 0.0
    %858 = vmatpush1.msra.mxu0 0.0
    %859 = vmatprep.subr.mxu0 0.0
    %860 = vmatpush1.msra.mxu0 0.0
    %861 = vmatprep.subr.mxu0 0.0
    %862 = vmatpush1.msra.mxu0 0.0
    %863 = vmatprep.subr.mxu0 0.0
    %864 = vmatpush1.msra.mxu0 0.0
    %865 = vmatprep.subr.mxu0 0.0
    %866 = vmatpush1.msra.mxu0 0.0
    %867 = vmatprep.subr.mxu0 0.0
    %868 = vmatpush1.msra.mxu0 0.0
    %869 = vmatprep.subr.mxu0 0.0
    %870 = vmatpush1.msra.mxu0 0.0
    %871 = vmatprep.subr.mxu0 0.0
    %872 = vmatpush1.msra.mxu0 0.0
    %873 = vmatprep.subr.mxu0 0.0
    %874 = vmatpush1.msra.mxu0 0.0
    %875 = vmatprep.subr.mxu0 0.0
    %876 = vmatpush1.msra.mxu0 0.0
    %877 = vmatprep.subr.mxu0 0.0
    %878 = vmatpush1.msra.mxu0 0.0
    %879 = vmatprep.subr.mxu0 0.0
    %880 = vmatpush1.msra.mxu0 0.0
    %881 = vmatprep.subr.mxu0 0.0
    %882 = vmatpush1.msra.mxu0 0.0
    %883 = vmatprep.subr.mxu0 0.0
    %884 = vmatpush1.msra.mxu0 0.0
    %885 = vmatprep.subr.mxu0 0.0
    %886 = vmatpush1.msra.mxu0 0.0
    %887 = vmatprep.mubr.f32.mxu0 0.0
    %888 = vmatmul.mubr.f32.gmra.mrb[0].mxu0 %v821
    %v889 = vpop.f32.mrb[0].mxu0
    %v890 = vadd.f32 0.0, %v889
    %v891 = vpop.f32.mrb[0].mxu0
    %892 = vdwg.mxu0
    %v893 = vadd.f32 %v817, %v890
    %v894 = vtanh.pop %v893
    %v895 = vxor.u32 %v893, 2147483648
    %v896 = vmul.f32 %v895, 1.442695
    %v897 = vpow.pop %v896
    %v898 = vadd.f32 %v897, 1.0
    %v899 = vrcp.pop %v898
    %v900 = vmul.f32 1.0, %v899
    %v901 = vsel %vm232, %v894, %v900
    %vm902 = vcmp.gt.s32.totalorder %v227, 5
    %v903 = vmul.f32 %v901, %v801
    %905 = vrot.lane.b32.xlu0 %v901, 64
    %v906 = vpop.permute.xlu0 %905
    %v908 = vmul.f32 %v901, %v906
    %910 = vrot.lane.b32.xlu0 %v908, 32
    %v911 = vpop.permute.xlu0 %910
    %v913 = vadd.f32 %v903, %v911
    %v914 = vsel %vm902, 1, 0
    %915 = vset.pattern.permute.xlu0 0
    %916 = vperm.xlu0 %915, %v914
    %v917 = vpop.permute.xlu0 %916
    %vm918 = vcmp.eq.s32.totalorder %v917, 1
    %v919 = vsel %vm918, %v913, %v801
    %v920 = vtanh.pop %v919
    %922 = vrot.lane.b32.xlu0 %v920, 64
    %v923 = vpop.permute.xlu0 %922
    %v925 = vmul.f32 %v901, %v923
    %v926 = vsel %vm918, %v925, %v808
    %v927 = vsel %vm918, %v925, 0.0
    %929 = vrot.lane.b32.xlu0 %v927, 32
    %v930 = vpop.permute.xlu0 %929
    %s932 = scalar_lea.vmem [#allocation3], 40
    %933 = vst.msk [vmem:[%s932] sm:$0xff] %vm234, %v930
    %s934 = scalar_lea.vmem [#allocation2], 48
    %v935 = vld [vmem:[%s934] sm:$0xff]
    %937 = vrot.lane.b32.xlu0 %v926, 32
    %v938 = vpop.permute.xlu0 %937
    %v939 = vsel %vm234, %v938, 0
    %941 = vmatprep.subr.mxu0 0.0
    %942 = vmatpush1.msra.mxu0 %v223
    %943 = vmatprep.subr.mxu0 0.0
    %944 = vmatpush1.msra.mxu0 %v224
    %945 = vmatprep.subr.mxu0 0.0
    %946 = vmatpush1.msra.mxu0 %v225
    %947 = vmatprep.subr.mxu0 0.0
    %948 = vmatpush1.msra.mxu0 %v226
    %949 = vmatprep.subr.mxu0 0.0
    %950 = vmatpush1.msra.mxu0 0.0
    %951 = vmatprep.subr.mxu0 0.0
    %952 = vmatpush1.msra.mxu0 0.0
    %953 = vmatprep.subr.mxu0 0.0
    %954 = vmatpush1.msra.mxu0 0.0
    %955 = vmatprep.subr.mxu0 0.0
    %956 = vmatpush1.msra.mxu0 0.0
    %957 = vmatprep.subr.mxu0 0.0
    %958 = vmatpush1.msra.mxu0 0.0
    %959 = vmatprep.subr.mxu0 0.0
    %960 = vmatpush1.msra.mxu0 0.0
    %961 = vmatprep.subr.mxu0 0.0
    %962 = vmatpush1.msra.mxu0 0.0
    %963 = vmatprep.subr.mxu0 0.0
    %964 = vmatpush1.msra.mxu0 0.0
    %965 = vmatprep.subr.mxu0 0.0
    %966 = vmatpush1.msra.mxu0 0.0
    %967 = vmatprep.subr.mxu0 0.0
    %968 = vmatpush1.msra.mxu0 0.0
    %969 = vmatprep.subr.mxu0 0.0
    %970 = vmatpush1.msra.mxu0 0.0
    %971 = vmatprep.subr.mxu0 0.0
    %972 = vmatpush1.msra.mxu0 0.0
    %973 = vmatprep.subr.mxu0 0.0
    %974 = vmatpush1.msra.mxu0 0.0
    %975 = vmatprep.subr.mxu0 0.0
    %976 = vmatpush1.msra.mxu0 0.0
    %977 = vmatprep.subr.mxu0 0.0
    %978 = vmatpush1.msra.mxu0 0.0
    %979 = vmatprep.subr.mxu0 0.0
    %980 = vmatpush1.msra.mxu0 0.0
    %981 = vmatprep.subr.mxu0 0.0
    %982 = vmatpush1.msra.mxu0 0.0
    %983 = vmatprep.subr.mxu0 0.0
    %984 = vmatpush1.msra.mxu0 0.0
    %985 = vmatprep.subr.mxu0 0.0
    %986 = vmatpush1.msra.mxu0 0.0
    %987 = vmatprep.subr.mxu0 0.0
    %988 = vmatpush1.msra.mxu0 0.0
    %989 = vmatprep.subr.mxu0 0.0
    %990 = vmatpush1.msra.mxu0 0.0
    %991 = vmatprep.subr.mxu0 0.0
    %992 = vmatpush1.msra.mxu0 0.0
    %993 = vmatprep.subr.mxu0 0.0
    %994 = vmatpush1.msra.mxu0 0.0
    %995 = vmatprep.subr.mxu0 0.0
    %996 = vmatpush1.msra.mxu0 0.0
    %997 = vmatprep.subr.mxu0 0.0
    %998 = vmatpush1.msra.mxu0 0.0
    %999 = vmatprep.subr.mxu0 0.0
    %1000 = vmatpush1.msra.mxu0 0.0
    %1001 = vmatprep.subr.mxu0 0.0
    %1002 = vmatpush1.msra.mxu0 0.0
    %1003 = vmatprep.subr.mxu0 0.0
    %1004 = vmatpush1.msra.mxu0 0.0
    %1005 = vmatprep.mubr.f32.mxu0 0.0
    %1006 = vmatmul.mubr.f32.gmra.mrb[0].mxu0 %v939
    %v1007 = vpop.f32.mrb[0].mxu0
    %v1008 = vadd.f32 0.0, %v1007
    %v1009 = vpop.f32.mrb[0].mxu0
    %1010 = vdwg.mxu0
    %v1011 = vadd.f32 %v935, %v1008
    %v1012 = vtanh.pop %v1011
    %v1013 = vxor.u32 %v1011, 2147483648
    %v1014 = vmul.f32 %v1013, 1.442695
    %v1015 = vpow.pop %v1014
    %v1016 = vadd.f32 %v1015, 1.0
    %v1017 = vrcp.pop %v1016
    %v1018 = vmul.f32 1.0, %v1017
    %v1019 = vsel %vm232, %v1012, %v1018
    %vm1020 = vcmp.gt.s32.totalorder %v227, 6
    %v1021 = vmul.f32 %v1019, %v919
    %1023 = vrot.lane.b32.xlu0 %v1019, 64
    %v1024 = vpop.permute.xlu0 %1023
    %v1026 = vmul.f32 %v1019, %v1024
    %1028 = vrot.lane.b32.xlu0 %v1026, 32
    %v1029 = vpop.permute.xlu0 %1028
    %v1031 = vadd.f32 %v1021, %v1029
    %v1032 = vsel %vm1020, 1, 0
    %1033 = vset.pattern.permute.xlu0 0
    %1034 = vperm.xlu0 %1033, %v1032
    %v1035 = vpop.permute.xlu0 %1034
    %vm1036 = vcmp.eq.s32.totalorder %v1035, 1
    %v1037 = vsel %vm1036, %v1031, %v919
    %v1038 = vtanh.pop %v1037
    %1040 = vrot.lane.b32.xlu0 %v1038, 64
    %v1041 = vpop.permute.xlu0 %1040
    %v1043 = vmul.f32 %v1019, %v1041
    %v1044 = vsel %vm1036, %v1043, %v926
    %v1045 = vsel %vm1036, %v1043, 0.0
    %1047 = vrot.lane.b32.xlu0 %v1045, 32
    %v1048 = vpop.permute.xlu0 %1047
    %s1050 = scalar_lea.vmem [#allocation3], 48
    %1051 = vst.msk [vmem:[%s1050] sm:$0xff] %vm234, %v1048
    %s1052 = scalar_lea.vmem [#allocation2], 56
    %v1053 = vld [vmem:[%s1052] sm:$0xff]
    %1055 = vrot.lane.b32.xlu0 %v1044, 32
    %v1056 = vpop.permute.xlu0 %1055
    %v1057 = vsel %vm234, %v1056, 0
    %1059 = vmatprep.subr.mxu0 0.0
    %1060 = vmatpush1.msra.mxu0 %v223
    %1061 = vmatprep.subr.mxu0 0.0
    %1062 = vmatpush1.msra.mxu0 %v224
    %1063 = vmatprep.subr.mxu0 0.0
    %1064 = vmatpush1.msra.mxu0 %v225
    %1065 = vmatprep.subr.mxu0 0.0
    %1066 = vmatpush1.msra.mxu0 %v226
    %1067 = vmatprep.subr.mxu0 0.0
    %1068 = vmatpush1.msra.mxu0 0.0
    %1069 = vmatprep.subr.mxu0 0.0
    %1070 = vmatpush1.msra.mxu0 0.0
    %1071 = vmatprep.subr.mxu0 0.0
    %1072 = vmatpush1.msra.mxu0 0.0
    %1073 = vmatprep.subr.mxu0 0.0
    %1074 = vmatpush1.msra.mxu0 0.0
    %1075 = vmatprep.subr.mxu0 0.0
    %1076 = vmatpush1.msra.mxu0 0.0
    %1077 = vmatprep.subr.mxu0 0.0
    %1078 = vmatpush1.msra.mxu0 0.0
    %1079 = vmatprep.subr.mxu0 0.0
    %1080 = vmatpush1.msra.mxu0 0.0
    %1081 = vmatprep.subr.mxu0 0.0
    %1082 = vmatpush1.msra.mxu0 0.0
    %1083 = vmatprep.subr.mxu0 0.0
    %1084 = vmatpush1.msra.mxu0 0.0
    %1085 = vmatprep.subr.mxu0 0.0
    %1086 = vmatpush1.msra.mxu0 0.0
    %1087 = vmatprep.subr.mxu0 0.0
    %1088 = vmatpush1.msra.mxu0 0.0
    %1089 = vmatprep.subr.mxu0 0.0
    %1090 = vmatpush1.msra.mxu0 0.0
    %1091 = vmatprep.subr.mxu0 0.0
    %1092 = vmatpush1.msra.mxu0 0.0
    %1093 = vmatprep.subr.mxu0 0.0
    %1094 = vmatpush1.msra.mxu0 0.0
    %1095 = vmatprep.subr.mxu0 0.0
    %1096 = vmatpush1.msra.mxu0 0.0
    %1097 = vmatprep.subr.mxu0 0.0
    %1098 = vmatpush1.msra.mxu0 0.0
    %1099 = vmatprep.subr.mxu0 0.0
    %1100 = vmatpush1.msra.mxu0 0.0
    %1101 = vmatprep.subr.mxu0 0.0
    %1102 = vmatpush1.msra.mxu0 0.0
    %1103 = vmatprep.subr.mxu0 0.0
    %1104 = vmatpush1.msra.mxu0 0.0
    %1105 = vmatprep.subr.mxu0 0.0
    %1106 = vmatpush1.msra.mxu0 0.0
    %1107 = vmatprep.subr.mxu0 0.0
    %1108 = vmatpush1.msra.mxu0 0.0
    %1109 = vmatprep.subr.mxu0 0.0
    %1110 = vmatpush1.msra.mxu0 0.0
    %1111 = vmatprep.subr.mxu0 0.0
    %1112 = vmatpush1.msra.mxu0 0.0
    %1113 = vmatprep.subr.mxu0 0.0
    %1114 = vmatpush1.msra.mxu0 0.0
    %1115 = vmatprep.subr.mxu0 0.0
    %1116 = vmatpush1.msra.mxu0 0.0
    %1117 = vmatprep.subr.mxu0 0.0
    %1118 = vmatpush1.msra.mxu0 0.0
    %1119 = vmatprep.subr.mxu0 0.0
    %1120 = vmatpush1.msra.mxu0 0.0
    %1121 = vmatprep.subr.mxu0 0.0
    %1122 = vmatpush1.msra.mxu0 0.0
    %1123 = vmatprep.mubr.f32.mxu0 0.0
    %1124 = vmatmul.mubr.f32.gmra.mrb[0].mxu0 %v1057
    %v1125 = vpop.f32.mrb[0].mxu0
    %v1126 = vadd.f32 0.0, %v1125
    %v1127 = vpop.f32.mrb[0].mxu0
    %1128 = vdwg.mxu0
    %v1129 = vadd.f32 %v1053, %v1126
    %v1130 = vtanh.pop %v1129
    %v1131 = vxor.u32 %v1129, 2147483648
    %v1132 = vmul.f32 %v1131, 1.442695
    %v1133 = vpow.pop %v1132
    %v1134 = vadd.f32 %v1133, 1.0
    %v1135 = vrcp.pop %v1134
    %v1136 = vmul.f32 1.0, %v1135
    %v1137 = vsel %vm232, %v1130, %v1136
    %vm1138 = vcmp.gt.s32.totalorder %v227, 7
    %v1139 = vmul.f32 %v1137, %v1037
    %1141 = vrot.lane.b32.xlu0 %v1137, 64
    %v1142 = vpop.permute.xlu0 %1141
    %v1144 = vmul.f32 %v1137, %v1142
    %1146 = vrot.lane.b32.xlu0 %v1144, 32
    %v1147 = vpop.permute.xlu0 %1146
    %v1149 = vadd.f32 %v1139, %v1147
    %v1150 = vsel %vm1138, 1, 0
    %1151 = vset.pattern.permute.xlu0 0
    %1152 = vperm.xlu0 %1151, %v1150
    %v1153 = vpop.permute.xlu0 %1152
    %vm1154 = vcmp.eq.s32.totalorder %v1153, 1
    %v1155 = vsel %vm1154, %v1149, %v1037
    %v1156 = vtanh.pop %v1155
    %1158 = vrot.lane.b32.xlu0 %v1156, 64
    %v1159 = vpop.permute.xlu0 %1158
    %v1161 = vmul.f32 %v1137, %v1159
    %v1162 = vsel %vm1154, %v1161, 0.0
    %1164 = vrot.lane.b32.xlu0 %v1162, 32
    %v1165 = vpop.permute.xlu0 %1164
    %s1167 = scalar_lea.vmem [#allocation3], 56
    %1168 = vst.msk [vmem:[%s1167] sm:$0xff] %vm234, %v1165
    %v1169 = vld [vmem:[#allocation3] sm:$0xff]
    %v1170 = vld [vmem:[#allocation3 + $0x8] sm:$0xff]
    %v1171 = vld [vmem:[#allocation3 + $0x10] sm:$0xff]
    %v1172 = vld [vmem:[#allocation3 + $0x18] sm:$0xff]
    %v1173 = vld [vmem:[#allocation3 + $0x20] sm:$0xff]
    %v1174 = vld [vmem:[#allocation3 + $0x28] sm:$0xff]
    %v1175 = vld [vmem:[#allocation3 + $0x30] sm:$0xff]
    %v1176 = vld [vmem:[#allocation3 + $0x38] sm:$0xff]
    %v1177 = vld [vmem:[#allocation9] sm:$0xff]
    %v1178 = vld [vmem:[#allocation9 + $0x8] sm:$0xff]
    %v1179 = vld [vmem:[#allocation9 + $0x10] sm:$0xff]
    %v1180 = vld [vmem:[#allocation9 + $0x18] sm:$0xff]
    %v1181 = vld [vmem:[%s6] sm:$0x1]
    %v1183 = vlaneseq
    %v1184 = vshrl.u32 %v1183, 7
    %v1185 = vsub.s32 0, %v1184
    %v1186 = vrot.slane %v1181, %v1185
    %v1189 = vsel %vm234, %v1169, 0
    %v1192 = vsel %vm234, %v1170, 0
    %v1195 = vsel %vm234, %v1171, 0
    %v1198 = vsel %vm234, %v1172, 0
    %v1201 = vsel %vm234, %v1173, 0
    %v1204 = vsel %vm234, %v1174, 0
    %v1207 = vsel %vm234, %v1175, 0
    %v1210 = vsel %vm234, %v1176, 0
    %1212 = vmatprep.subr.mxu0 0.0
    %1213 = vmatpush1.msra.mxu0 %v1177
    %1214 = vmatprep.subr.mxu0 0.0
    %1215 = vmatpush1.msra.mxu0 %v1178
    %1216 = vmatprep.subr.mxu0 0.0
    %1217 = vmatpush1.msra.mxu0 %v1179
    %1218 = vmatprep.subr.mxu0 0.0
    %1219 = vmatpush1.msra.mxu0 %v1180
    %1220 = vmatprep.subr.mxu0 0.0
    %1221 = vmatpush1.msra.mxu0 0.0
    %1222 = vmatprep.subr.mxu0 0.0
    %1223 = vmatpush1.msra.mxu0 0.0
    %1224 = vmatprep.subr.mxu0 0.0
    %1225 = vmatpush1.msra.mxu0 0.0
    %1226 = vmatprep.subr.mxu0 0.0
    %1227 = vmatpush1.msra.mxu0 0.0
    %1228 = vmatprep.subr.mxu0 0.0
    %1229 = vmatpush1.msra.mxu0 0.0
    %1230 = vmatprep.subr.mxu0 0.0
    %1231 = vmatpush1.msra.mxu0 0.0
    %1232 = vmatprep.subr.mxu0 0.0
    %1233 = vmatpush1.msra.mxu0 0.0
    %1234 = vmatprep.subr.mxu0 0.0
    %1235 = vmatpush1.msra.mxu0 0.0
    %1236 = vmatprep.subr.mxu0 0.0
    %1237 = vmatpush1.msra.mxu0 0.0
    %1238 = vmatprep.subr.mxu0 0.0
    %1239 = vmatpush1.msra.mxu0 0.0
    %1240 = vmatprep.subr.mxu0 0.0
    %1241 = vmatpush1.msra.mxu0 0.0
    %1242 = vmatprep.subr.mxu0 0.0
    %1243 = vmatpush1.msra.mxu0 0.0
    %1244 = vmatprep.subr.mxu0 0.0
    %1245 = vmatpush1.msra.mxu0 0.0
    %1246 = vmatprep.subr.mxu0 0.0
    %1247 = vmatpush1.msra.mxu0 0.0
    %1248 = vmatprep.subr.mxu0 0.0
    %1249 = vmatpush1.msra.mxu0 0.0
    %1250 = vmatprep.subr.mxu0 0.0
    %1251 = vmatpush1.msra.mxu0 0.0
    %1252 = vmatprep.subr.mxu0 0.0
    %1253 = vmatpush1.msra.mxu0 0.0
    %1254 = vmatprep.subr.mxu0 0.0
    %1255 = vmatpush1.msra.mxu0 0.0
    %1256 = vmatprep.subr.mxu0 0.0
    %1257 = vmatpush1.msra.mxu0 0.0
    %1258 = vmatprep.subr.mxu0 0.0
    %1259 = vmatpush1.msra.mxu0 0.0
    %1260 = vmatprep.subr.mxu0 0.0
    %1261 = vmatpush1.msra.mxu0 0.0
    %1262 = vmatprep.subr.mxu0 0.0
    %1263 = vmatpush1.msra.mxu0 0.0
    %1264 = vmatprep.subr.mxu0 0.0
    %1265 = vmatpush1.msra.mxu0 0.0
    %1266 = vmatprep.subr.mxu0 0.0
    %1267 = vmatpush1.msra.mxu0 0.0
    %1268 = vmatprep.subr.mxu0 0.0
    %1269 = vmatpush1.msra.mxu0 0.0
    %1270 = vmatprep.subr.mxu0 0.0
    %1271 = vmatpush1.msra.mxu0 0.0
    %1272 = vmatprep.subr.mxu0 0.0
    %1273 = vmatpush1.msra.mxu0 0.0
    %1274 = vmatprep.subr.mxu0 0.0
    %1275 = vmatpush1.msra.mxu0 0.0
    %1276 = vmatprep.mubr.f32.mxu0 0.0
    %1277 = vmatmul.mubr.f32.gmra.mrb[0].mxu0 %v1189
    %v1278 = vpop.f32.mrb[0].mxu0
    %v1279 = vadd.f32 %v1186, %v1278
    %v1280 = vpop.f32.mrb[0].mxu0
    %1281 = vmatprep.mubr.f32.mxu0 0.0
    %1282 = vmatmul.mubr.f32.gmra.mrb[0].mxu0 %v1192
    %v1283 = vpop.f32.mrb[0].mxu0
    %v1284 = vadd.f32 %v1186, %v1283
    %v1285 = vpop.f32.mrb[0].mxu0
    %1286 = vmatprep.mubr.f32.mxu0 0.0
    %1287 = vmatmul.mubr.f32.gmra.mrb[0].mxu0 %v1195
    %v1288 = vpop.f32.mrb[0].mxu0
    %v1289 = vadd.f32 %v1186, %v1288
    %v1290 = vpop.f32.mrb[0].mxu0
    %1291 = vmatprep.mubr.f32.mxu0 0.0
    %1292 = vmatmul.mubr.f32.gmra.mrb[0].mxu0 %v1198
    %v1293 = vpop.f32.mrb[0].mxu0
    %v1294 = vadd.f32 %v1186, %v1293
    %v1295 = vpop.f32.mrb[0].mxu0
    %1296 = vmatprep.mubr.f32.mxu0 0.0
    %1297 = vmatmul.mubr.f32.gmra.mrb[0].mxu0 %v1201
    %v1298 = vpop.f32.mrb[0].mxu0
    %v1299 = vadd.f32 %v1186, %v1298
    %v1300 = vpop.f32.mrb[0].mxu0
    %1301 = vmatprep.mubr.f32.mxu0 0.0
    %1302 = vmatmul.mubr.f32.gmra.mrb[0].mxu0 %v1204
    %v1303 = vpop.f32.mrb[0].mxu0
    %v1304 = vadd.f32 %v1186, %v1303
    %v1305 = vpop.f32.mrb[0].mxu0
    %1306 = vmatprep.mubr.f32.mxu0 0.0
    %1307 = vmatmul.mubr.f32.gmra.mrb[0].mxu0 %v1207
    %v1308 = vpop.f32.mrb[0].mxu0
    %v1309 = vadd.f32 %v1186, %v1308
    %v1310 = vpop.f32.mrb[0].mxu0
    %1311 = vmatprep.mubr.f32.mxu0 0.0
    %1312 = vmatmul.mubr.f32.gmra.mrb[0].mxu0 %v1210
    %v1313 = vpop.f32.mrb[0].mxu0
    %v1314 = vadd.f32 %v1186, %v1313
    %v1315 = vpop.f32.mrb[0].mxu0
    %1316 = vdwg.mxu0
    %1317 = vst [vmem:[#allocation10] sm:$0xff] %v1279
    %1318 = vst [vmem:[#allocation10 + $0x8] sm:$0xff] %v1284
    %1319 = vst [vmem:[#allocation10 + $0x10] sm:$0xff] %v1289
    %1320 = vst [vmem:[#allocation10 + $0x18] sm:$0xff] %v1294
    %1321 = vst [vmem:[#allocation10 + $0x20] sm:$0xff] %v1299
    %1322 = vst [vmem:[#allocation10 + $0x28] sm:$0xff] %v1304
    %1323 = vst [vmem:[#allocation10 + $0x30] sm:$0xff] %v1309
    %1324 = vst [vmem:[#allocation10 + $0x38] sm:$0xff] %v1314
    // Predicated region
    $region42: #{tpu_custom_call.1} parent=1 // pred_check
      _
    $region43: #{tpu_custom_call.1} parent=1 // pred_check_branch
      %1326 = sbr.rel (0) target = $region45
    $region44: #{tpu_custom_call.1} parent=1 // pred_region
      %s1328 = ssub.s32 1024, 1024
      %1329 = vsyncadd [#allocation6], %s1328
      %s1330 = sshll.u32 [#allocation10], 4
      %s1331 = int_to_ptr.vmem [resolvable:$true] %s1330
      %1336 = dma.vmem_to_hbm [thread:$0]  %s1331, 1024, %s7, [#allocation6], 128, 128, 8
    $region45: #{tpu_custom_call.1} parent=1 // pred_fallthru
      _
    // Predicated region
    $region46: #{tpu_custom_call.1} parent=1 // pred_check
      _
    $region47: #{tpu_custom_call.1} parent=1 // pred_check_branch
      %1338 = sbr.rel (0) target = $region49
    $region48: #{tpu_custom_call.1} parent=1 // pred_region
      %1339 = dma.done [#allocation6], 1024
    $region49: #{tpu_custom_call.1} parent=1 // pred_fallthru
      _
    %1340 = vsyncpa [#allocation5], 1
    %1341 = vsyncpa [#allocation8], 1
    %1342 = vsyncpa [#allocation6], 1

</llo_original>
